<compile_context>
chip_gen: v7x
topology: tpu7x:2x2x1
jax: 0.10.0
libtpu: 0.0.40
codegen_flags: <defaults>
</compile_context>

<pallas_src>
import functools
import numpy as np

import jax
import jax.numpy as jnp
from jax.experimental import pallas as pl
from jax.experimental.pallas import tpu as pltpu

LN_EPS = 1e-5
BN_SCALE = np.float32(1.0 / np.sqrt(1.0 + 1e-5))

swinformer_settings = {
    'L': [0.2, 192, [2, 2, 18, 2], [6, 12, 24, 48], 12, [192, 384, 768, 1536]],
    'B': [0.2, 128, [2, 2, 18, 2], [4, 8, 16, 32], 12, [128, 256, 512, 1024]],
    'S': [0.3, 96, [2, 2, 18, 2], [3, 6, 12, 24], 7, [96, 192, 384, 768]],
    'T': [0.2, 96, [2, 2, 6, 2], [3, 6, 12, 24], 7, [96, 192, 384, 768]],
    'TINY_DEMO': [0.0, 32, [1, 1, 2, 1], [1, 2, 4, 8], 4, [32, 64, 128, 256]],
}

PPM_SCALES = (1, 2, 3, 6)


def _round_up(x, m):
    return (x + m - 1) // m * m


# ---------------------------------------------------------------------------
# Matmul kernel: bf16 operands, f32 accumulation, fused bias/act/residual.
# ---------------------------------------------------------------------------
def _matmul_kernel(*refs, act, has_res):
    if has_res:
        a_ref, b_ref, bias_ref, res_ref, o_ref, acc_ref = refs
    else:
        a_ref, b_ref, bias_ref, o_ref, acc_ref = refs
        res_ref = None

    @pl.when(pl.program_id(2) == 0)
    def _():
        acc_ref[...] = jnp.zeros_like(acc_ref)

    acc_ref[...] += jnp.dot(a_ref[...], b_ref[...],
                            preferred_element_type=jnp.float32)

    @pl.when(pl.program_id(2) == pl.num_programs(2) - 1)
    def _():
        y = acc_ref[...] + bias_ref[...]
        if act == 'relu':
            y = jnp.maximum(y, 0.0)
        elif act == 'gelu':
            # tanh-approximation GELU on the EUP (reference: exact-erf GELU).
            c = np.float32(np.sqrt(2.0 / np.pi))
            y = 0.5 * y * (1.0 + jnp.tanh(c * (y + np.float32(0.044715) * y * y * y)))
        if res_ref is not None:
            y = y + res_ref[...].astype(jnp.float32)
        o_ref[...] = y.astype(o_ref.dtype)


@functools.partial(jax.jit, static_argnames=('act', 'out_dtype'))
def _pallas_matmul_impl(a, b, bias, res, act, out_dtype):
    M, K = a.shape
    _, N = b.shape
    a = a.astype(jnp.bfloat16)
    b = b.astype(jnp.bfloat16)
    bias = bias.astype(jnp.float32)

    # --- tile selection; skip padding when shapes already comply ------------
    if K % 128 == 0:
        tk = 512 if K % 512 == 0 else (256 if K % 256 == 0 else 128)
        Kp = K
    elif K <= 2048:
        tk = Kp = K                      # full-extent K block (no padding)
    else:
        Kp = _round_up(K, 128)
        tk = 128

    if N % 128 == 0:
        tn = 512 if N % 512 == 0 else (256 if N % 256 == 0 else 128)
        Np = N
    elif N <= 2048:
        tn = Np = N                      # full-extent lane block
    else:
        Np = _round_up(N, 128)
        tn = 128

    if M <= 512:
        tm = Mp = _round_up(M, 8)
    else:
        tm = 512 if M % 512 == 0 else (256 if M % 256 == 0 else 128)
        Mp = _round_up(M, tm)

    a_p = a if (Mp, Kp) == (M, K) else (
        jnp.zeros((Mp, Kp), jnp.bfloat16).at[:M, :K].set(a))
    b_p = b if (Kp, Np) == (K, N) else (
        jnp.zeros((Kp, Np), jnp.bfloat16).at[:K, :N].set(b))
    bias_p = bias.reshape(1, N) if Np == N else (
        jnp.zeros((1, Np), jnp.float32).at[0, :N].set(bias))

    in_specs = [pl.BlockSpec((tm, tk), lambda i, j, k: (i, k)),
                pl.BlockSpec((tk, tn), lambda i, j, k: (k, j)),
                pl.BlockSpec((1, tn), lambda i, j, k: (0, j))]
    args = [a_p, b_p, bias_p]
    if res is not None:
        r = res.astype(jnp.float32)
        r_p = r if (Mp, Np) == (M, N) else (
            jnp.zeros((Mp, Np), jnp.float32).at[:M, :N].set(r))
        in_specs.append(pl.BlockSpec((tm, tn), lambda i, j, k: (i, j)))
        args.append(r_p)

    out = pl.pallas_call(
        functools.partial(_matmul_kernel, act=act, has_res=res is not None),
        out_shape=jax.ShapeDtypeStruct((Mp, Np), out_dtype),
        grid_spec=pltpu.PrefetchScalarGridSpec(
            num_scalar_prefetch=0,
            grid=(Mp // tm, Np // tn, Kp // tk),
            in_specs=in_specs,
            out_specs=pl.BlockSpec((tm, tn), lambda i, j, k: (i, j)),
            scratch_shapes=[pltpu.VMEM((tm, tn), jnp.float32)]),
        compiler_params=pltpu.CompilerParams(
            dimension_semantics=("parallel", "parallel", "arbitrary")),
    )(*args)
    if (Mp, Np) != (M, N):
        out = out[:M, :N]
    return out


def pallas_matmul(a, b, bias=None, act=None, residual=None, out_dtype=jnp.float32):
    M, K = a.shape
    N = b.shape[1]
    if bias is None:
        bias = jnp.zeros((N,), jnp.float32)
    if min(M, K, N) < 8:
        # Degenerate shapes (tiny PPM pool / resize matrices): leave to XLA.
        y = jnp.dot(a.astype(jnp.float32), b.astype(jnp.float32)) + bias
        if act == 'relu':
            y = jnp.maximum(y, 0.0)
        elif act == 'gelu':
            y = jax.nn.gelu(y, approximate=True)
        if residual is not None:
            y = y + residual.astype(jnp.float32)
        return y.astype(out_dtype)
    return _pallas_matmul_impl(a, b, bias, residual, act, out_dtype)


# ---------------------------------------------------------------------------
# LayerNorm kernel (f32 statistics, arbitrary in/out dtypes, row-blocked).
# ---------------------------------------------------------------------------
def _layernorm_kernel(x_ref, g_ref, b_ref, o_ref):
    x = x_ref[...].astype(jnp.float32)
    mu = jnp.mean(x, axis=-1, keepdims=True)
    var = jnp.mean(jnp.square(x - mu), axis=-1, keepdims=True)
    y = (x - mu) * jax.lax.rsqrt(var + LN_EPS) * g_ref[...] + b_ref[...]
    o_ref[...] = y.astype(o_ref.dtype)


@functools.partial(jax.jit, static_argnames=('out_dtype',))
def layernorm(x, g, b, out_dtype=jnp.float32):
    R, D = x.shape
    rt = 256 if D >= 1024 else 512          # keep block well under v5e scoped VMEM
    rt = min(rt, _round_up(R, 8))
    Rp = _round_up(R, rt)
    x_p = x if Rp == R else jnp.zeros((Rp, D), x.dtype).at[:R].set(x)
    out = pl.pallas_call(
        _layernorm_kernel,
        out_shape=jax.ShapeDtypeStruct((Rp, D), out_dtype),
        grid=(Rp // rt,),
        in_specs=[pl.BlockSpec((rt, D), lambda i: (i, 0)),
                  pl.BlockSpec((1, D), lambda i: (0, 0)),
                  pl.BlockSpec((1, D), lambda i: (0, 0))],
        out_specs=pl.BlockSpec((rt, D), lambda i: (i, 0)),
        compiler_params=pltpu.CompilerParams(dimension_semantics=("parallel",)),
    )(x_p, g.reshape(1, D).astype(jnp.float32), b.reshape(1, D).astype(jnp.float32))
    return out[:R] if Rp != R else out


# ---------------------------------------------------------------------------
# Window attention kernel: gw windows x nHg heads per step, lane-dense output.
# ---------------------------------------------------------------------------
def _window_attn_kernel(q_ref, k_ref, v_ref, bias_ref, mask_ref, o_ref):
    gw, nHg, T, Dh = q_ref.shape
    q = q_ref[...].reshape(gw * nHg, T, Dh)
    k = k_ref[...].reshape(gw * nHg, T, Dh)
    v = v_ref[...].reshape(gw * nHg, T, Dh)

    s = jnp.einsum('btd,bsd->bts', q, k, preferred_element_type=jnp.float32)
    s = s.reshape(gw, nHg, T, T)
    s = s + bias_ref[...][None, :, :, :] + mask_ref[...][:, None, :, :]
    s = s - jnp.max(s, axis=-1, keepdims=True)
    p = jnp.exp(s)
    p = p * pl.reciprocal(jnp.sum(p, axis=-1, keepdims=True), approx=True)

    p = p.reshape(gw * nHg, T, T).astype(v.dtype)
    out = jnp.einsum('bts,bsd->btd', p, v, preferred_element_type=jnp.float32)
    if nHg > 1:
        out = out.reshape(gw, nHg, T, Dh)
        out = jnp.transpose(out, (0, 2, 1, 3))          # -> [gw, T, nHg, Dh]
    out = out.reshape(o_ref.shape)                       # [gw, T, nHg*Dh]
    o_ref[...] = out.astype(o_ref.dtype)


def _attn_tiling(nW, nH, T, Dh, nWm):
    """Pick (gw, nHg) from a VMEM budget, keeping divisibility constraints."""
    budget = 10 * 1024 * 1024

    def cost(g, hg):
        qkv = 3 * g * hg * T * Dh * 2 * 2               # bf16, double-buffered
        outb = g * T * hg * Dh * 2 * 2                   # bf16 out block
        bias = hg * T * T * 4 * 2
        mask = (g if nWm > 1 else 1) * T * T * 4 * 2
        inter = 3 * g * hg * T * T * 4                   # in-kernel f32 scores
        return qkv + outb + bias + mask + inter

    head_opts = [d for d in range(nH, 0, -1)
                 if nH % d == 0 and (d == nH or (d * Dh) % 128 == 0)]
    win_opts = [g for g in range(nW, 0, -1)
                if nW % g == 0 and (nWm == 1 or nWm % g == 0)]

    for hg in head_opts:
        best = None
        for g in win_opts:
            if g * T > 4096 or cost(g, hg) > budget:
                continue
            if best is None:
                best = g
            if nW // g >= 2:                             # keep >=2 blocks (megacore)
                best = g
                break
        if best is not None:
            return best, hg
    return 1, nH


@jax.jit
def window_attention(q, k, v, bias, mask):
    """q,k,v: [nW, nH, T, Dh] bf16; bias: [nH, T, T]; mask: [nWm, T, T].

    Returns [nW, T, nH*Dh] bf16 (lane-dense, ready for the proj matmul)."""
    nW, nH, T, Dh = q.shape
    nWm = mask.shape[0]
    gw, nHg = _attn_tiling(nW, nH, T, Dh, nWm)
    C = nH * Dh

    qkv_spec = pl.BlockSpec((gw, nHg, T, Dh), lambda h, w: (w, h, 0, 0))
    bias_spec = pl.BlockSpec((nHg, T, T), lambda h, w: (h, 0, 0))
    if nWm == 1:
        mask_spec = pl.BlockSpec((1, T, T), lambda h, w: (0, 0, 0))
    else:
        nblk = nWm // gw
        mask_spec = pl.BlockSpec((gw, T, T), lambda h, w: (w % nblk, 0, 0))
    out_spec = pl.BlockSpec((gw, T, nHg * Dh), lambda h, w: (w, 0, h))

    return pl.pallas_call(
        _window_attn_kernel,
        out_shape=jax.ShapeDtypeStruct((nW, T, C), jnp.bfloat16),
        grid=(nH // nHg, nW // gw),
        in_specs=[qkv_spec, qkv_spec, qkv_spec, bias_spec, mask_spec],
        out_specs=out_spec,
        compiler_params=pltpu.CompilerParams(
            dimension_semantics=("parallel", "parallel")),
    )(q.astype(jnp.bfloat16), k.astype(jnp.bfloat16), v.astype(jnp.bfloat16),
      bias.astype(jnp.float32), mask.astype(jnp.float32))


# ---------------------------------------------------------------------------
# Host-side helpers: interpolation / pooling matrices, masks, im2col.
# ---------------------------------------------------------------------------
def _interp_matrix(in_size, out_size, align_corners):
    out_idx = np.arange(out_size, dtype=np.float64)
    if align_corners:
        src = np.zeros_like(out_idx) if out_size == 1 else out_idx * (in_size - 1) / (out_size - 1)
    else:
        src = (out_idx + 0.5) * (in_size / out_size) - 0.5
        src = np.clip(src, 0.0, None)
    i0 = np.clip(np.floor(src).astype(np.int64), 0, in_size - 1)
    i1 = np.clip(i0 + 1, 0, in_size - 1)
    w1 = src - i0
    w0 = 1.0 - w1
    M = np.zeros((out_size, in_size), np.float32)
    M[np.arange(out_size), i0] += w0
    M[np.arange(out_size), i1] += w1
    return M


def _adaptive_pool_matrix(in_size, out_size):
    M = np.zeros((out_size, in_size), np.float32)
    for i in range(out_size):
        start = (i * in_size) // out_size
        end = -((-(i + 1) * in_size) // out_size)
        M[i, start:end] = 1.0 / (end - start)
    return M


def _apply_hw_matrices(x, Mh, Mw):
    """x: [B,H,W,C] -> [B,Ho,Wo,C]; keeps C on lanes (lane-dense matmul outputs)."""
    B, H, W, C = x.shape
    Ho, Wo = Mh.shape[0], Mw.shape[0]
    xh = jnp.transpose(x, (1, 0, 2, 3)).reshape(H, B * W * C)
    xh = pallas_matmul(jnp.asarray(Mh), xh)
    x = jnp.transpose(xh.reshape(Ho, B, W, C), (1, 0, 2, 3))
    xw = jnp.transpose(x, (2, 0, 1, 3)).reshape(W, B * Ho * C)
    xw = pallas_matmul(jnp.asarray(Mw), xw)
    return jnp.transpose(xw.reshape(Wo, B, Ho, C), (1, 2, 0, 3))


def resize_nhwc(x, out_h, out_w, align_corners):
    _, H, W, _ = x.shape
    return _apply_hw_matrices(x, _interp_matrix(H, out_h, align_corners),
                              _interp_matrix(W, out_w, align_corners))


def adaptive_avg_pool_nhwc(x, out_h, out_w):
    _, H, W, _ = x.shape
    return _apply_hw_matrices(x, _adaptive_pool_matrix(H, out_h),
                              _adaptive_pool_matrix(W, out_w))


def _im2col3x3(x):
    B, H, W, C = x.shape
    xp = jnp.pad(x.astype(jnp.bfloat16), ((0, 0), (1, 1), (1, 1), (0, 0)))
    cols = [xp[:, i:i + H, j:j + W, :] for i in range(3) for j in range(3)]
    return jnp.concatenate(cols, axis=-1).reshape(B * H * W, 9 * C)


def conv_module(x, w, ksize):
    """ConvModule = Conv(bias=False) + BatchNorm(eval) + ReLU (fused epilogue)."""
    B, H, W, C = x.shape
    w = (w * BN_SCALE).astype(jnp.float32)      # fold eval-mode BN scale into weights
    if ksize == 1:
        y = pallas_matmul(x.reshape(-1, C), w, act='relu')
    else:
        # TODO(synk): fused 9-tap conv kernel (halo'd row blocks) to drop im2col.
        y = pallas_matmul(_im2col3x3(x), w, act='relu')
    return y.reshape(B, H, W, -1)


@functools.lru_cache(maxsize=None)
def _relative_position_index(ws):
    coords = np.stack(np.meshgrid(np.arange(ws), np.arange(ws), indexing='ij'))
    cf = coords.reshape(2, -1)
    rel = (cf[:, :, None] - cf[:, None, :]).transpose(1, 2, 0).astype(np.int64)
    rel[:, :, 0] += ws - 1
    rel[:, :, 1] += ws - 1
    rel[:, :, 0] *= 2 * ws - 1
    return rel.sum(-1)  # [T, T]


@functools.lru_cache(maxsize=None)
def _shift_attn_mask(H, W, ws, shift):
    img_mask = np.zeros((1, H, W, 1), np.float32)
    cnt = 0
    for hs in (slice(0, -ws), slice(-ws, -shift), slice(-shift, None)):
        for wsl in (slice(0, -ws), slice(-ws, -shift), slice(-shift, None)):
            img_mask[:, hs, wsl, :] = cnt
            cnt += 1
    mw = img_mask.reshape(1, H // ws, ws, W // ws, ws, 1)
    mw = mw.transpose(0, 1, 3, 2, 4, 5).reshape(-1, ws * ws)
    attn_mask = mw[:, None, :] - mw[:, :, None]
    return np.where(attn_mask != 0, -100.0, 0.0).astype(np.float32)  # [nW_img, T, T]


# ---------------------------------------------------------------------------
# Swin backbone forward
# ---------------------------------------------------------------------------
def swin_block(tok, B, H, W, bp, nH, ws, shift):
    C = tok.shape[-1]
    Dh = C // nH
    T = ws * ws
    shortcut = tok                                            # [B*H*W, C] f32

    x = layernorm(tok, bp['ln1_g'], bp['ln1_b'], out_dtype=jnp.bfloat16)
    x = x.reshape(B, H, W, C)
    if shift > 0:
        x = jnp.roll(x, (-shift, -shift), axis=(1, 2))
    xw = x.reshape(B, H // ws, ws, W // ws, ws, C)
    xw = xw.transpose(0, 1, 3, 2, 4, 5).reshape(-1, T, C)     # [nW, T, C] bf16
    nWtot = xw.shape[0]

    qkv = pallas_matmul(xw.reshape(-1, C), bp['qkv_w'], bias=bp['qkv_b'],
                        out_dtype=jnp.bfloat16)
    qkv = qkv.reshape(nWtot, T, 3, nH, Dh).transpose(2, 0, 3, 1, 4)  # [3,nW,nH,T,Dh]
    q, k, v = qkv[0], qkv[1], qkv[2]          # q scale already folded into weights

    rpi = _relative_position_index(ws).reshape(-1)
    rel_bias = bp['rpb_table'][rpi].reshape(T, T, nH).transpose(2, 0, 1)  # [nH,T,T]
    if shift > 0:
        mask = jnp.asarray(_shift_attn_mask(H, W, ws, shift))             # [nW_img,T,T]
    else:
        mask = jnp.zeros((1, T, T), jnp.float32)

    attn = window_attention(q, k, v, rel_bias, mask)          # [nW, T, C] bf16
    xr = attn.reshape(B, H // ws, W // ws, ws, ws, C)
    xr = xr.transpose(0, 1, 3, 2, 4, 5).reshape(B, H, W, C)
    if shift > 0:
        xr = jnp.roll(xr, (shift, shift), axis=(1, 2))
    # proj is position-wise so it commutes with the window-reverse permutation;
    # the attention residual is fused into the proj epilogue.
    x = pallas_matmul(xr.reshape(-1, C), bp['proj_w'], bias=bp['proj_b'],
                      residual=shortcut)

    y = layernorm(x, bp['ln2_g'], bp['ln2_b'], out_dtype=jnp.bfloat16)
    y = pallas_matmul(y, bp['fc1_w'], bias=bp['fc1_b'], act='gelu',
                      out_dtype=jnp.bfloat16)
    return pallas_matmul(y, bp['fc2_w'], bias=bp['fc2_b'], residual=x)


def patch_merging(tok, B, H, W, mp):
    C = tok.shape[-1]
    x = tok.reshape(B, H, W, C)
    x0 = x[:, 0::2, 0::2, :]
    x1 = x[:, 1::2, 0::2, :]
    x2 = x[:, 0::2, 1::2, :]
    x3 = x[:, 1::2, 1::2, :]
    x = jnp.concatenate([x0, x1, x2, x3], axis=-1).reshape(-1, 4 * C)
    x = layernorm(x, mp['ln_g'], mp['ln_b'], out_dtype=jnp.bfloat16)
    x = pallas_matmul(x, mp['w'])
    return x, H // 2, W // 2


def swin_backbone_forward(p, cfg, x_nhwc):
    _, embed_dim, depths, num_heads, window, dims = cfg
    B, H, W, _ = x_nhwc.shape
    assert H % 4 == 0 and W % 4 == 0
    Hc, Wc = H // 4, W // 4

    # Patch embedding: Conv2d(3, embed_dim, 4, 4) as a matmul (bias fused).
    patches = x_nhwc.reshape(B, Hc, 4, Wc, 4, 3).transpose(0, 1, 3, 2, 4, 5)
    patches = patches.reshape(B * Hc * Wc, 48)
    tok = pallas_matmul(patches, p['patch_w'], bias=p['patch_b'],
                        out_dtype=jnp.bfloat16)
    tok = layernorm(tok, p['patch_ln_g'], p['patch_ln_b'])

    feats = []
    for si in range(4):
        sp = p['stages'][si]
        ws = min(window, Hc, Wc)
        assert Hc % ws == 0 and Wc % ws == 0
        for bi in range(depths[si]):
            shift = 0 if (bi % 2 == 0 or ws == min(Hc, Wc)) else ws // 2
            tok = swin_block(tok, B, Hc, Wc, sp['blocks'][bi], num_heads[si], ws, shift)
        f = layernorm(tok, sp['out_ln_g'], sp['out_ln_b'])
        feats.append(f.reshape(B, Hc, Wc, dims[si]))
        if si < 3:
            tok, Hc, Wc = patch_merging(tok, B, Hc, Wc, sp['merge'])
    return feats


# ---------------------------------------------------------------------------
# UPerHead forward (PPM + FPN)
# ---------------------------------------------------------------------------
def uper_head_forward(p, feats):
    f4 = feats[-1]
    B, H4, W4, _ = f4.shape

    ppm_outs = []
    for idx, s in enumerate(PPM_SCALES):
        y = adaptive_avg_pool_nhwc(f4, s, s)
        y = conv_module(y, p['ppm_conv'][idx], 1)
        y = resize_nhwc(y, H4, W4, align_corners=True)
        ppm_outs.append(y)
    f = conv_module(jnp.concatenate([f4] + ppm_outs[::-1], axis=-1),
                    p['ppm_bottleneck'], 3)

    fpn_features = [f]
    for i in (2, 1, 0):
        feat = conv_module(feats[i], p['fpn_in'][i], 1)
        f = feat + resize_nhwc(f, feat.shape[1], feat.shape[2], align_corners=False)
        fpn_features.append(conv_module(f, p['fpn_out'][i], 3))
    fpn_features = fpn_features[::-1]

    H0, W0 = fpn_features[0].shape[1:3]
    fused = [fpn_features[0]] + [resize_nhwc(fp, H0, W0, align_corners=False)
                                 for fp in fpn_features[1:]]
    out = conv_module(jnp.concatenate(fused, axis=-1), p['bottleneck'], 3)
    # Dropout2d(0.1) is identity at inference.
    B, H0, W0, ch = out.shape
    logits = pallas_matmul(out.reshape(-1, ch), p['seg_w'], bias=p['seg_b'])
    return logits.reshape(B, H0, W0, -1)


def swinformer_forward(params, cfg, x_nchw):
    x = jnp.transpose(x_nchw, (0, 2, 3, 1)).astype(jnp.float32)     # NCHW -> NHWC
    feats = swin_backbone_forward(params['backbone'], cfg, x)
    y = uper_head_forward(params['decode'], feats)
    y = resize_nhwc(y, x.shape[1], x.shape[2], align_corners=False)
    return jnp.transpose(y, (0, 3, 1, 2))                           # NHWC -> NCHW


# ---------------------------------------------------------------------------
# Deterministic parameter construction
# ---------------------------------------------------------------------------
class _Init:
    def __init__(self, seed):
        self._key = jax.random.PRNGKey(seed)

    def normal(self, shape, std=0.02):
        self._key, k = jax.random.split(self._key)
        return jax.random.normal(k, shape, jnp.float32) * std

    def zeros(self, shape):
        return jnp.zeros(shape, jnp.float32)

    def ones(self, shape):
        return jnp.ones(shape, jnp.float32)


def build_swinformer_params(backbone_type, num_classes, decode_channels, seed=0):
    cfg = swinformer_settings[backbone_type]
    _, embed_dim, depths, num_heads, window, dims = cfg
    ini = _Init(seed)

    bb = {
        'patch_w': ini.normal((48, embed_dim)),
        'patch_b': ini.zeros((embed_dim,)),
        'patch_ln_g': ini.ones((embed_dim,)),
        'patch_ln_b': ini.zeros((embed_dim,)),
        'stages': [],
    }
    for si in range(4):
        C = dims[si]
        nH = num_heads[si]
        scale = np.float32((C // nH) ** -0.5)
        blocks = []
        for _ in range(depths[si]):
            qkv_w = ini.normal((C, 3 * C))
            qkv_b = ini.zeros((3 * C,))
            # Exact algebraic fold of the reference's runtime `q * head_dim**-0.5`
            # into the q columns of the qkv projection.
            qkv_w = qkv_w.at[:, :C].multiply(scale)
            qkv_b = qkv_b.at[:C].multiply(scale)
            blocks.append({
                'ln1_g': ini.ones((C,)), 'ln1_b': ini.zeros((C,)),
                'qkv_w': qkv_w, 'qkv_b': qkv_b,
                'proj_w': ini.normal((C, C)), 'proj_b': ini.zeros((C,)),
                'rpb_table': ini.normal(((2 * window - 1) ** 2, nH)),
                'ln2_g': ini.ones((C,)), 'ln2_b': ini.zeros((C,)),
                'fc1_w': ini.normal((C, 4 * C)), 'fc1_b': ini.zeros((4 * C,)),
                'fc2_w': ini.normal((4 * C, C)), 'fc2_b': ini.zeros((C,)),
            })
        stage = {'blocks': blocks,
                 'out_ln_g': ini.ones((C,)), 'out_ln_b': ini.zeros((C,))}
        if si < 3:
            stage['merge'] = {'ln_g': ini.ones((4 * C,)), 'ln_b': ini.zeros((4 * C,)),
                              'w': ini.normal((4 * C, 2 * C))}
        bb['stages'].append(stage)

    ch = decode_channels
    C4 = dims[3]
    dec = {
        'ppm_conv': [ini.normal((C4, ch)) for _ in PPM_SCALES],
        'ppm_bottleneck': ini.normal((9 * (C4 + len(PPM_SCALES) * ch), ch)),
        'fpn_in': [ini.normal((dims[i], ch)) for i in range(3)],
        'fpn_out': [ini.normal((9 * ch, ch)) for _ in range(3)],
        'bottleneck': ini.normal((9 * 4 * ch, ch)),
        'seg_w': ini.normal((ch, num_classes)),
        'seg_b': ini.zeros((num_classes,)),
    }
    return {'backbone': bb, 'decode': dec}, cfg


if __name__ == "__main__":
    # Small demo config: same architecture/structure as the real settings,
    # scaled down so the script compiles and runs quickly.
    params, cfg = build_swinformer_params('TINY_DEMO', num_classes=19,
                                          decode_channels=64, seed=0)
    x = jax.random.normal(jax.random.PRNGKey(0), (2, 3, 128, 128), jnp.float32)

    y = swinformer_forward(params, cfg, x)
    y = jax.block_until_ready(y)

    assert y.shape == (2, 19, 128, 128), y.shape
    assert bool(jnp.all(jnp.isfinite(y)))
    print("KERNEL_OK")
</pallas_src>

<mosaic_0001>
module attributes {stable_mosaic.version = 11 : i64} {
  func.func @_matmul_kernel(%arg0: i32, %arg1: i32, %arg2: i32, %arg3: memref<512x48xbf16, #tpu.memory_space<vmem>>, %arg4: memref<48x32xbf16, #tpu.memory_space<vmem>>, %arg5: memref<1x32xf32, #tpu.memory_space<vmem>>, %arg6: memref<512x32xbf16, #tpu.memory_space<vmem>>, %arg7: memref<512x32xf32, #tpu.memory_space<vmem>>) attributes {dimension_semantics = [#tpu.dimension_semantics<parallel>, #tpu.dimension_semantics<parallel>, #tpu.dimension_semantics<arbitrary>], iteration_bounds = array<i64: 4, 1, 1>, scalar_prefetch = 0 : i64, scratch_operands = 1 : i64, tpu.core_type = #tpu.core_type<tc>, window_params = [{transform_indices = @transform_0, window_bounds = array<i64: 512, 48>}, {transform_indices = @transform_1, window_bounds = array<i64: 48, 32>}, {transform_indices = @transform_2, window_bounds = array<i64: 1, 32>}, {transform_indices = @transform_3, window_bounds = array<i64: 512, 32>}]} {
    %c0_i32 = arith.constant 0 : i32
    %0 = arith.cmpi eq, %arg2, %c0_i32 : i32
    %1 = arith.extui %0 : i1 to i32
    %c0_i32_0 = arith.constant 0 : i32
    %2 = arith.cmpi ne, %1, %c0_i32_0 : i32
    scf.if %2 {
      %cst_10 = arith.constant 0.000000e+00 : f32
      %12 = vector.broadcast %cst_10 : f32 to vector<512x32xf32>
      %c0_11 = arith.constant 0 : index
      %c0_12 = arith.constant 0 : index
      %13 = vector.load %arg7[%c0_11, %c0_12] : memref<512x32xf32, #tpu.memory_space<vmem>>, vector<512x32xf32>
      tpu.vector_store %arg7[%c0_11, %c0_12], %12 {strides = array<i32>} : memref<512x32xf32, #tpu.memory_space<vmem>>, vector<512x32xf32>,
    } else {
    }
    %c0 = arith.constant 0 : index
    %c0_1 = arith.constant 0 : index
    %3 = vector.load %arg7[%c0, %c0_1] : memref<512x32xf32, #tpu.memory_space<vmem>>, vector<512x32xf32>
    %c0_2 = arith.constant 0 : index
    %c0_3 = arith.constant 0 : index
    %4 = vector.load %arg3[%c0_2, %c0_3] : memref<512x48xbf16, #tpu.memory_space<vmem>>, vector<512x48xbf16>
    %c0_4 = arith.constant 0 : index
    %c0_5 = arith.constant 0 : index
    %5 = vector.load %arg4[%c0_4, %c0_5] : memref<48x32xbf16, #tpu.memory_space<vmem>>, vector<48x32xbf16>
    %cst = arith.constant dense<0.000000e+00> : vector<512x32xf32>
    %6 = tpu.matmul %4, %5, %cst {dimension_numbers = #tpu.dot_dimension_numbers<[1], [0], [0], [1], [0, 0, 1, 1], [], []>} : vector<512x48xbf16>, vector<48x32xbf16>, vector<512x32xf32> -> vector<512x32xf32>
    %7 = arith.addf %3, %6 : vector<512x32xf32>
    %c0_6 = arith.constant 0 : index
    %c0_7 = arith.constant 0 : index
    %8 = vector.load %arg7[%c0_6, %c0_7] : memref<512x32xf32, #tpu.memory_space<vmem>>, vector<512x32xf32>
    tpu.vector_store %arg7[%c0_6, %c0_7], %7 {strides = array<i32>} : memref<512x32xf32, #tpu.memory_space<vmem>>, vector<512x32xf32>,
    %c0_i32_8 = arith.constant 0 : i32
    %9 = arith.cmpi eq, %arg2, %c0_i32_8 : i32
    %10 = arith.extui %9 : i1 to i32
    %c0_i32_9 = arith.constant 0 : i32
    %11 = arith.cmpi ne, %10, %c0_i32_9 : i32
    scf.if %11 {
      %c0_10 = arith.constant 0 : index
      %c0_11 = arith.constant 0 : index
      %12 = vector.load %arg7[%c0_10, %c0_11] : memref<512x32xf32, #tpu.memory_space<vmem>>, vector<512x32xf32>
      %c0_12 = arith.constant 0 : index
      %c0_13 = arith.constant 0 : index
      %13 = vector.load %arg5[%c0_12, %c0_13] : memref<1x32xf32, #tpu.memory_space<vmem>>, vector<1x32xf32>
      %14 = vector.broadcast %13 : vector<1x32xf32> to vector<512x32xf32>
      %15 = arith.addf %12, %14 : vector<512x32xf32>
      %16 = arith.truncf %15 : vector<512x32xf32> to vector<512x32xbf16>
      %c0_14 = arith.constant 0 : index
      %c0_15 = arith.constant 0 : index
      %17 = vector.load %arg6[%c0_14, %c0_15] : memref<512x32xbf16, #tpu.memory_space<vmem>>, vector<512x32xbf16>
      tpu.vector_store %arg6[%c0_14, %c0_15], %16 {strides = array<i32>} : memref<512x32xbf16, #tpu.memory_space<vmem>>, vector<512x32xbf16>,
    } else {
    }
    return
  }
  func.func @transform_0(%arg0: i32, %arg1: i32, %arg2: i32) -> (i32, i32) {
    %c0_i32 = arith.constant 0 : i32
    return %arg0, %arg2 : i32, i32
  }
  func.func @transform_1(%arg0: i32, %arg1: i32, %arg2: i32) -> (i32, i32) {
    %c0_i32 = arith.constant 0 : i32
    return %arg2, %arg1 : i32, i32
  }
  func.func @transform_2(%arg0: i32, %arg1: i32, %arg2: i32) -> (i32, i32) {
    %c0_i32 = arith.constant 0 : i32
    %c0_i32_0 = arith.constant 0 : i32
    return %c0_i32, %arg1 : i32, i32
  }
  func.func @transform_3(%arg0: i32, %arg1: i32, %arg2: i32) -> (i32, i32) {
    %c0_i32 = arith.constant 0 : i32
    return %arg0, %arg1 : i32, i32
  }
}

</mosaic_0001>

<llo_original>
// kernel: _pallas_matmul_impl.1
$region0: #{_pallas_matmul_impl.1}
  #allocation0 [shape = 'u32[]', space=smem, size = 0x4, offset = 0x4, fixed_abs, tag = 'smem constant byte address 0x4 - core index']
  #allocation1 [shape = 'u32[144,128]{1,0:T(1,128)}', space=vmem, size = 0x12000, scoped, tag = 'internal scratch']
  #allocation2 [shape = 'f32[512,32]{1,0:T(8,128)}', space=vmem, size = 0x40000, scoped, tag = 'scratch operand']
  %s0 = inlined_call_operand.vmem [shape: bf16[2048,48], index: 0, kind: input, shape index: {}]
  %s1 = inlined_call_operand.vmem [shape: bf16[48,32], index: 1, kind: input, shape index: {}]
  %s2 = inlined_call_operand.vmem [shape: f32[1,32], index: 2, kind: input, shape index: {}]
  %s3 = inlined_call_operand.vmem [shape: bf16[2048,32], index: 3, kind: output, shape index: {}]
  %s4 = sld [smem:[#allocation0]]
  $region53: #{_pallas_matmul_impl.1} parent=0
    _
  %s6 = ssub.s32 1, %s4
  %s7 = scalar_select 0, %s6, %s4
  loop: start=0, step=1, limit=6
  $region2: #{_pallas_matmul_impl.1} parent=0 // loop_pre_header
    _
  $region3: #{_pallas_matmul_impl.1} parent=0 // loop_header
    %s9 = sphi 0, %s13
    %p10 = scmp.ge.s32.totalorder %s9, 6
    %s16 = sphi 0, %s35
    %s17 = sphi 0, %s31
    %s18 = sphi 0, %s27
    %s19 = sphi 0, %s16
    %s20 = sphi 0, %s17
    %s21 = sphi 0, %s18
    %s22 = sphi 0, %s19
    %s23 = sphi 0, %s20
    %s24 = sphi 0, %s21
    %s40 = sphi 0, %s42
    %s43 = sphi 0, %s40
    %s44 = sphi 0, %s43
    %s60 = sphi 0, %s44
    %s68 = sphi 0, %s70
    %s71 = sphi 0, %s68
    %s72 = sphi 0, %s71
    %s88 = sphi 0, %s72
    %s94 = sphi 0, %s96
    %s97 = sphi 0, %s94
    %s98 = sphi 0, %s97
    %s114 = sphi 0, %s98
    %s122 = sphi 0, %s124
    %s125 = sphi 0, %s122
    %s126 = sphi 0, %s125
    %s142 = sphi 0, %s126
  $region4: #{_pallas_matmul_impl.1} parent=0 // loop_header_branch
    %12 = sbr.rel (%p10) target = $region8
  $region5: #{_pallas_matmul_impl.1} parent=0 // loop_body
    %s14 = ssub.s32 %s9, 1
    %s15 = ssub.s32 %s9, 2
    %s25 = sadd.s32 1, %s18
    %p26 = scmp.ge.s32.totalorder %s25, 1
    %s27 = scalar_select %p26, 0, %s25
    %s28 = sadd.s32 1, %s17
    %s29 = scalar_select %p26, %s28, %s17
    %p30 = scmp.ge.s32.totalorder %s29, 1
    %s31 = scalar_select %p30, 0, %s29
    %s32 = sadd.s32 1, %s16
    %s33 = scalar_select %p30, %s32, %s16
    %p34 = scmp.ge.s32.totalorder %s33, 4
    %s35 = scalar_select %p34, 0, %s33
    %s36 = ssub.s32 %s16, %s35
    %s37 = ssub.s32 %s18, %s27
    %s38 = sor.u32 %s36, %s37
    %p39 = scmp.eq.s32.totalorder %s38, 0
    %s41 = sadd.s32 %s40, 1
    %s42 = scalar_select %p39, %s40, %s41
    %p45 = pneg %p39
    %p46 = scmp.eq.s32.totalorder %s9, 3
    %p47 = por %p45, %p46
    %p48 = scmp.ne.s32.totalorder %s40, %s43
    %p49 = scmp.eq.s32.totalorder %s9, 0
    %p50 = por %p48, %p49
    %p51 = scmp.ne.s32.totalorder %s40, %s43
    %p52 = scmp.eq.s32.totalorder %s14, 3
    %p53 = por %p51, %p52
    %p54 = scmp.ne.s32.totalorder %s43, %s44
    %p55 = scmp.eq.s32.totalorder %s14, 0
    %p56 = por %p54, %p55
    %p57 = scmp.ne.s32.totalorder %s43, %s44
    %p58 = scmp.eq.s32.totalorder %s15, 3
    %p59 = por %p57, %p58
    %p61 = scmp.ne.s32.totalorder %s44, %s60
    %p62 = scmp.eq.s32.totalorder %s15, 0
    %p63 = por %p61, %p62
    %s64 = ssub.s32 %s18, %s27
    %s65 = ssub.s32 %s17, %s31
    %s66 = sor.u32 %s64, %s65
    %p67 = scmp.eq.s32.totalorder %s66, 0
    %s69 = sadd.s32 %s68, 1
    %s70 = scalar_select %p67, %s68, %s69
    %p73 = pneg %p67
    %p74 = scmp.eq.s32.totalorder %s9, 3
    %p75 = por %p73, %p74
    %p76 = scmp.ne.s32.totalorder %s68, %s71
    %p77 = scmp.eq.s32.totalorder %s9, 0
    %p78 = por %p76, %p77
    %p79 = scmp.ne.s32.totalorder %s68, %s71
    %p80 = scmp.eq.s32.totalorder %s14, 3
    %p81 = por %p79, %p80
    %p82 = scmp.ne.s32.totalorder %s71, %s72
    %p83 = scmp.eq.s32.totalorder %s14, 0
    %p84 = por %p82, %p83
    %p85 = scmp.ne.s32.totalorder %s71, %s72
    %p86 = scmp.eq.s32.totalorder %s15, 3
    %p87 = por %p85, %p86
    %p89 = scmp.ne.s32.totalorder %s72, %s88
    %p90 = scmp.eq.s32.totalorder %s15, 0
    %p91 = por %p89, %p90
    %s92 = ssub.s32 %s17, %s31
    %p93 = scmp.eq.s32.totalorder %s92, 0
    %s95 = sadd.s32 %s94, 1
    %s96 = scalar_select %p93, %s94, %s95
    %p99 = pneg %p93
    %p100 = scmp.eq.s32.totalorder %s9, 3
    %p101 = por %p99, %p100
    %p102 = scmp.ne.s32.totalorder %s94, %s97
    %p103 = scmp.eq.s32.totalorder %s9, 0
    %p104 = por %p102, %p103
    %p105 = scmp.ne.s32.totalorder %s94, %s97
    %p106 = scmp.eq.s32.totalorder %s14, 3
    %p107 = por %p105, %p106
    %p108 = scmp.ne.s32.totalorder %s97, %s98
    %p109 = scmp.eq.s32.totalorder %s14, 0
    %p110 = por %p108, %p109
    %p111 = scmp.ne.s32.totalorder %s97, %s98
    %p112 = scmp.eq.s32.totalorder %s15, 3
    %p113 = por %p111, %p112
    %p115 = scmp.ne.s32.totalorder %s98, %s114
    %p116 = scmp.eq.s32.totalorder %s15, 0
    %p117 = por %p115, %p116
    %s118 = ssub.s32 %s16, %s35
    %s119 = ssub.s32 %s17, %s31
    %s120 = sor.u32 %s118, %s119
    %p121 = scmp.eq.s32.totalorder %s120, 0
    %s123 = sadd.s32 %s122, 1
    %s124 = scalar_select %p121, %s122, %s123
    %p127 = pneg %p121
    %p128 = scmp.eq.s32.totalorder %s9, 3
    %p129 = por %p127, %p128
    %p130 = scmp.ne.s32.totalorder %s122, %s125
    %p131 = scmp.eq.s32.totalorder %s9, 0
    %p132 = por %p130, %p131
    %p133 = scmp.ne.s32.totalorder %s122, %s125
    %p134 = scmp.eq.s32.totalorder %s14, 3
    %p135 = por %p133, %p134
    %p136 = scmp.ne.s32.totalorder %s125, %s126
    %p137 = scmp.eq.s32.totalorder %s14, 0
    %p138 = por %p136, %p137
    %p139 = scmp.ne.s32.totalorder %s125, %s126
    %p140 = scmp.eq.s32.totalorder %s15, 3
    %p141 = por %p139, %p140
    %p143 = scmp.ne.s32.totalorder %s126, %s142
    %p144 = scmp.eq.s32.totalorder %s15, 0
    %p145 = por %p143, %p144
    %p146 = scmp.le.s32.totalorder 1, %s9
    %p147 = scmp.lt.s32.totalorder %s9, 5
    %p148 = pnand %p146, %p147
    %p149 = pneg %p148
    // Predicated region
    $region9: #{_pallas_matmul_impl.1} parent=5 // pred_check
      _
    $region10: #{_pallas_matmul_impl.1} parent=5 // pred_check_branch
      %151 = sbr.rel (%p148) target = $region12
    $region11: #{_pallas_matmul_impl.1} parent=5 // pred_region
      %s152 = ssub.s32 %s9, 1
      // Predicated region
      $region13: #{_pallas_matmul_impl.1} parent=11 // pred_check
        %p153 = pneg %p84
      $region14: #{_pallas_matmul_impl.1} parent=11 // pred_check_branch
        %155 = sbr.rel (%p153) target = $region16
      $region15: #{_pallas_matmul_impl.1} parent=11 // pred_region
        %s156 = smul.u32 6, %s21
        %p157 = scmp.lt.s32.totalorder %s156, 5
        %s158 = scalar_select %p157, %s156, 5
        %p159 = scmp.lt.s32.totalorder %s20, 0
        %s160 = scalar_select %p159, %s20, 0
        %s161 = sadd.s32 %s160, %s158
        %s162 = smul.addr %s161, 4
        %s163 = scalar_lea.vmem %s1, %s162
        %s164 = smul.u32 6, %s21
      $region16: #{_pallas_matmul_impl.1} parent=11 // pred_fallthru
        _
      // Predicated region
      $region17: #{_pallas_matmul_impl.1} parent=11 // pred_check
        %p165 = pneg %p110
      $region18: #{_pallas_matmul_impl.1} parent=11 // pred_check_branch
        %167 = sbr.rel (%p165) target = $region20
      $region19: #{_pallas_matmul_impl.1} parent=11 // pred_region
        %p168 = scmp.lt.s32.totalorder %s20, 0
        %s169 = scalar_select %p168, %s20, 0
        %s170 = scalar_lea.vmem %s2, %s169
      $region20: #{_pallas_matmul_impl.1} parent=11 // pred_fallthru
        _
    $region12: #{_pallas_matmul_impl.1} parent=5 // pred_fallthru
      _
    %p171 = scmp.lt.s32.totalorder %s9, 4
    // Predicated region
    $region21: #{_pallas_matmul_impl.1} parent=5 // pred_check
      %p172 = pneg %p171
    $region22: #{_pallas_matmul_impl.1} parent=5 // pred_check_branch
      %174 = sbr.rel (%p172) target = $region24
    $region23: #{_pallas_matmul_impl.1} parent=5 // pred_region
      // Predicated region
      $region25: #{_pallas_matmul_impl.1} parent=23 // pred_check
        %p175 = pneg %p50
      $region26: #{_pallas_matmul_impl.1} parent=23 // pred_check_branch
        %177 = sbr.rel (%p175) target = $region28
      $region27: #{_pallas_matmul_impl.1} parent=23 // pred_region
        %s178 = smul.u32 64, %s16
        %p179 = scmp.lt.s32.totalorder %s178, 255
        %s180 = scalar_select %p179, %s178, 255
        %p181 = scmp.lt.s32.totalorder %s18, 0
        %s182 = scalar_select %p181, %s18, 0
        %s183 = sadd.s32 %s182, %s180
        %s184 = smul.addr %s183, 4
        %s185 = scalar_lea.vmem %s0, %s184
        %s186 = smul.u32 64, %s16
      $region28: #{_pallas_matmul_impl.1} parent=23 // pred_fallthru
        _
    $region24: #{_pallas_matmul_impl.1} parent=5 // pred_fallthru
      _
    %p187 = scmp.le.s32.totalorder 1, %s9
    %p188 = scmp.lt.s32.totalorder %s9, 5
    %p189 = pnand %p187, %p188
    %p190 = pneg %p189
    // Predicated region
    $region29: #{_pallas_matmul_impl.1} parent=5 // pred_check
      _
    $region30: #{_pallas_matmul_impl.1} parent=5 // pred_check_branch
      %192 = sbr.rel (%p189) target = $region32
    $region31: #{_pallas_matmul_impl.1} parent=5 // pred_region
      %s193 = ssub.s32 %s9, 1
      %s194 = smul.u32 64, %s19
      %p195 = scmp.lt.s32.totalorder %s194, 255
      %s196 = scalar_select %p195, %s194, 255
      %p197 = scmp.lt.s32.totalorder %s21, 0
      %s198 = scalar_select %p197, %s21, 0
      %s199 = sadd.s32 %s198, %s196
      %s200 = smul.addr %s199, 4
      %s201 = scalar_lea.vmem %s0, %s200
      %p202 = pneg %p56
      %p203 = pneg %p53
      %s204 = smul.u32 6, %s21
      %p205 = scmp.lt.s32.totalorder %s204, 5
      %s206 = scalar_select %p205, %s204, 5
      %p207 = scmp.lt.s32.totalorder %s20, 0
      %s208 = scalar_select %p207, %s20, 0
      %s209 = sadd.s32 %s208, %s206
      %s210 = smul.addr %s209, 4
      %s211 = scalar_lea.vmem %s1, %s210
      %p212 = pneg %p84
      %p213 = pneg %p81
      %p214 = scmp.lt.s32.totalorder %s20, 0
      %s215 = scalar_select %p214, %s20, 0
      %s216 = scalar_lea.vmem %s2, %s215
      %p217 = pneg %p110
      %p218 = pneg %p107
      %p219 = pneg %p138
      %p220 = pneg %p135
      %s221 = smul.u32 64, %s19
      %p222 = scmp.lt.s32.totalorder %s221, 255
      %s223 = scalar_select %p222, %s221, 255
      %p224 = scmp.lt.s32.totalorder %s20, 0
      %s225 = scalar_select %p224, %s20, 0
      %s226 = sadd.s32 %s225, %s223
      %s227 = smul.addr %s226, 4
      %s228 = scalar_lea.vmem %s3, %s227
      %s229 = smul.u32 64, %s19
      %p230 = scmp.lt.s32.totalorder %s229, 255
      %s231 = scalar_select %p230, %s229, 255
      %p232 = scmp.lt.s32.totalorder %s21, 0
      %s233 = scalar_select %p232, %s21, 0
      %s234 = sadd.s32 %s233, %s231
      %s235 = smul.addr %s234, 4
      %s236 = scalar_lea.vmem %s0, %s235
      %s237 = smul.u32 64, %s19
      %s238 = smul.u32 6, %s21
      %p239 = scmp.lt.s32.totalorder %s238, 5
      %s240 = scalar_select %p239, %s238, 5
      %p241 = scmp.lt.s32.totalorder %s20, 0
      %s242 = scalar_select %p241, %s20, 0
      %s243 = sadd.s32 %s242, %s240
      %s244 = smul.addr %s243, 4
      %s245 = scalar_lea.vmem %s1, %s244
      %s246 = smul.u32 6, %s21
      %p247 = scmp.lt.s32.totalorder %s20, 0
      %s248 = scalar_select %p247, %s20, 0
      %s249 = scalar_lea.vmem %s2, %s248
      %s250 = smul.u32 64, %s19
      %p251 = scmp.lt.s32.totalorder %s250, 255
      %s252 = scalar_select %p251, %s250, 255
      %p253 = scmp.lt.s32.totalorder %s20, 0
      %s254 = scalar_select %p253, %s20, 0
      %s255 = sadd.s32 %s254, %s252
      %s256 = smul.addr %s255, 4
      %s257 = scalar_lea.vmem %s3, %s256
      %s258 = smul.u32 64, %s19
      %p260 = scmp.eq.s32.totalorder %s21, 0
      // Predicated region
      $region33: #{_pallas_matmul_impl.1} parent=31 // pred_check
        %p261 = pneg %p260
      $region34: #{_pallas_matmul_impl.1} parent=31 // pred_check_branch
        %263 = sbr.rel (%p261) target = $region36
      $region35: #{_pallas_matmul_impl.1} parent=31 // pred_region
        %vm264 = vcmask 261120
        %265 = vst.msk [vmem:[#allocation2] sm:$0xff] %vm264, 0.0
        %266 = vst.msk [vmem:[#allocation2 + $0x8] sm:$0xff] %vm264, 0.0
        %267 = vst.msk [vmem:[#allocation2 + $0x10] sm:$0xff] %vm264, 0.0
        %268 = vst.msk [vmem:[#allocation2 + $0x18] sm:$0xff] %vm264, 0.0
        %269 = vst.msk [vmem:[#allocation2 + $0x20] sm:$0xff] %vm264, 0.0
        %270 = vst.msk [vmem:[#allocation2 + $0x28] sm:$0xff] %vm264, 0.0
        %271 = vst.msk [vmem:[#allocation2 + $0x30] sm:$0xff] %vm264, 0.0
        %272 = vst.msk [vmem:[#allocation2 + $0x38] sm:$0xff] %vm264, 0.0
        %273 = vst.msk [vmem:[#allocation2 + $0x40] sm:$0xff] %vm264, 0.0
        %274 = vst.msk [vmem:[#allocation2 + $0x48] sm:$0xff] %vm264, 0.0
        %275 = vst.msk [vmem:[#allocation2 + $0x50] sm:$0xff] %vm264, 0.0
        %276 = vst.msk [vmem:[#allocation2 + $0x58] sm:$0xff] %vm264, 0.0
        %277 = vst.msk [vmem:[#allocation2 + $0x60] sm:$0xff] %vm264, 0.0
        %278 = vst.msk [vmem:[#allocation2 + $0x68] sm:$0xff] %vm264, 0.0
        %279 = vst.msk [vmem:[#allocation2 + $0x70] sm:$0xff] %vm264, 0.0
        %280 = vst.msk [vmem:[#allocation2 + $0x78] sm:$0xff] %vm264, 0.0
        %281 = vst.msk [vmem:[#allocation2 + $0x80] sm:$0xff] %vm264, 0.0
        %282 = vst.msk [vmem:[#allocation2 + $0x88] sm:$0xff] %vm264, 0.0
        %283 = vst.msk [vmem:[#allocation2 + $0x90] sm:$0xff] %vm264, 0.0
        %284 = vst.msk [vmem:[#allocation2 + $0x98] sm:$0xff] %vm264, 0.0
        %285 = vst.msk [vmem:[#allocation2 + $0xa0] sm:$0xff] %vm264, 0.0
        %286 = vst.msk [vmem:[#allocation2 + $0xa8] sm:$0xff] %vm264, 0.0
        %287 = vst.msk [vmem:[#allocation2 + $0xb0] sm:$0xff] %vm264, 0.0
        %288 = vst.msk [vmem:[#allocation2 + $0xb8] sm:$0xff] %vm264, 0.0
        %289 = vst.msk [vmem:[#allocation2 + $0xc0] sm:$0xff] %vm264, 0.0
        %290 = vst.msk [vmem:[#allocation2 + $0xc8] sm:$0xff] %vm264, 0.0
        %291 = vst.msk [vmem:[#allocation2 + $0xd0] sm:$0xff] %vm264, 0.0
        %292 = vst.msk [vmem:[#allocation2 + $0xd8] sm:$0xff] %vm264, 0.0
        %293 = vst.msk [vmem:[#allocation2 + $0xe0] sm:$0xff] %vm264, 0.0
        %294 = vst.msk [vmem:[#allocation2 + $0xe8] sm:$0xff] %vm264, 0.0
        %295 = vst.msk [vmem:[#allocation2 + $0xf0] sm:$0xff] %vm264, 0.0
        %296 = vst.msk [vmem:[#allocation2 + $0xf8] sm:$0xff] %vm264, 0.0
        %297 = vst.msk [vmem:[#allocation2 + $0x100] sm:$0xff] %vm264, 0.0
        %298 = vst.msk [vmem:[#allocation2 + $0x108] sm:$0xff] %vm264, 0.0
        %299 = vst.msk [vmem:[#allocation2 + $0x110] sm:$0xff] %vm264, 0.0
        %300 = vst.msk [vmem:[#allocation2 + $0x118] sm:$0xff] %vm264, 0.0
        %301 = vst.msk [vmem:[#allocation2 + $0x120] sm:$0xff] %vm264, 0.0
        %302 = vst.msk [vmem:[#allocation2 + $0x128] sm:$0xff] %vm264, 0.0
        %303 = vst.msk [vmem:[#allocation2 + $0x130] sm:$0xff] %vm264, 0.0
        %304 = vst.msk [vmem:[#allocation2 + $0x138] sm:$0xff] %vm264, 0.0
        %305 = vst.msk [vmem:[#allocation2 + $0x140] sm:$0xff] %vm264, 0.0
        %306 = vst.msk [vmem:[#allocation2 + $0x148] sm:$0xff] %vm264, 0.0
        %307 = vst.msk [vmem:[#allocation2 + $0x150] sm:$0xff] %vm264, 0.0
        %308 = vst.msk [vmem:[#allocation2 + $0x158] sm:$0xff] %vm264, 0.0
        %309 = vst.msk [vmem:[#allocation2 + $0x160] sm:$0xff] %vm264, 0.0
        %310 = vst.msk [vmem:[#allocation2 + $0x168] sm:$0xff] %vm264, 0.0
        %311 = vst.msk [vmem:[#allocation2 + $0x170] sm:$0xff] %vm264, 0.0
        %312 = vst.msk [vmem:[#allocation2 + $0x178] sm:$0xff] %vm264, 0.0
        %313 = vst.msk [vmem:[#allocation2 + $0x180] sm:$0xff] %vm264, 0.0
        %314 = vst.msk [vmem:[#allocation2 + $0x188] sm:$0xff] %vm264, 0.0
        %315 = vst.msk [vmem:[#allocation2 + $0x190] sm:$0xff] %vm264, 0.0
        %316 = vst.msk [vmem:[#allocation2 + $0x198] sm:$0xff] %vm264, 0.0
        %317 = vst.msk [vmem:[#allocation2 + $0x1a0] sm:$0xff] %vm264, 0.0
        %318 = vst.msk [vmem:[#allocation2 + $0x1a8] sm:$0xff] %vm264, 0.0
        %319 = vst.msk [vmem:[#allocation2 + $0x1b0] sm:$0xff] %vm264, 0.0
        %320 = vst.msk [vmem:[#allocation2 + $0x1b8] sm:$0xff] %vm264, 0.0
        %321 = vst.msk [vmem:[#allocation2 + $0x1c0] sm:$0xff] %vm264, 0.0
        %322 = vst.msk [vmem:[#allocation2 + $0x1c8] sm:$0xff] %vm264, 0.0
        %323 = vst.msk [vmem:[#allocation2 + $0x1d0] sm:$0xff] %vm264, 0.0
        %324 = vst.msk [vmem:[#allocation2 + $0x1d8] sm:$0xff] %vm264, 0.0
        %325 = vst.msk [vmem:[#allocation2 + $0x1e0] sm:$0xff] %vm264, 0.0
        %326 = vst.msk [vmem:[#allocation2 + $0x1e8] sm:$0xff] %vm264, 0.0
        %327 = vst.msk [vmem:[#allocation2 + $0x1f0] sm:$0xff] %vm264, 0.0
        %328 = vst.msk [vmem:[#allocation2 + $0x1f8] sm:$0xff] %vm264, 0.0
      $region36: #{_pallas_matmul_impl.1} parent=31 // pred_fallthru
        _
      %v329 = vld [vmem:[#allocation2] sm:$0xff]
      %v330 = vld [vmem:[#allocation2 + $0x8] sm:$0xff]
      %v331 = vld [vmem:[#allocation2 + $0x10] sm:$0xff]
      %v332 = vld [vmem:[#allocation2 + $0x18] sm:$0xff]
      %v333 = vld [vmem:[#allocation2 + $0x20] sm:$0xff]
      %v334 = vld [vmem:[#allocation2 + $0x28] sm:$0xff]
      %v335 = vld [vmem:[#allocation2 + $0x30] sm:$0xff]
      %v336 = vld [vmem:[#allocation2 + $0x38] sm:$0xff]
      %v337 = vld [vmem:[#allocation2 + $0x40] sm:$0xff]
      %v338 = vld [vmem:[#allocation2 + $0x48] sm:$0xff]
      %v339 = vld [vmem:[#allocation2 + $0x50] sm:$0xff]
      %v340 = vld [vmem:[#allocation2 + $0x58] sm:$0xff]
      %v341 = vld [vmem:[#allocation2 + $0x60] sm:$0xff]
      %v342 = vld [vmem:[#allocation2 + $0x68] sm:$0xff]
      %v343 = vld [vmem:[#allocation2 + $0x70] sm:$0xff]
      %v344 = vld [vmem:[#allocation2 + $0x78] sm:$0xff]
      %v345 = vld [vmem:[#allocation2 + $0x80] sm:$0xff]
      %v346 = vld [vmem:[#allocation2 + $0x88] sm:$0xff]
      %v347 = vld [vmem:[#allocation2 + $0x90] sm:$0xff]
      %v348 = vld [vmem:[#allocation2 + $0x98] sm:$0xff]
      %v349 = vld [vmem:[#allocation2 + $0xa0] sm:$0xff]
      %v350 = vld [vmem:[#allocation2 + $0xa8] sm:$0xff]
      %v351 = vld [vmem:[#allocation2 + $0xb0] sm:$0xff]
      %v352 = vld [vmem:[#allocation2 + $0xb8] sm:$0xff]
      %v353 = vld [vmem:[#allocation2 + $0xc0] sm:$0xff]
      %v354 = vld [vmem:[#allocation2 + $0xc8] sm:$0xff]
      %v355 = vld [vmem:[#allocation2 + $0xd0] sm:$0xff]
      %v356 = vld [vmem:[#allocation2 + $0xd8] sm:$0xff]
      %v357 = vld [vmem:[#allocation2 + $0xe0] sm:$0xff]
      %v358 = vld [vmem:[#allocation2 + $0xe8] sm:$0xff]
      %v359 = vld [vmem:[#allocation2 + $0xf0] sm:$0xff]
      %v360 = vld [vmem:[#allocation2 + $0xf8] sm:$0xff]
      %v361 = vld [vmem:[#allocation2 + $0x100] sm:$0xff]
      %v362 = vld [vmem:[#allocation2 + $0x108] sm:$0xff]
      %v363 = vld [vmem:[#allocation2 + $0x110] sm:$0xff]
      %v364 = vld [vmem:[#allocation2 + $0x118] sm:$0xff]
      %v365 = vld [vmem:[#allocation2 + $0x120] sm:$0xff]
      %v366 = vld [vmem:[#allocation2 + $0x128] sm:$0xff]
      %v367 = vld [vmem:[#allocation2 + $0x130] sm:$0xff]
      %v368 = vld [vmem:[#allocation2 + $0x138] sm:$0xff]
      %v369 = vld [vmem:[#allocation2 + $0x140] sm:$0xff]
      %v370 = vld [vmem:[#allocation2 + $0x148] sm:$0xff]
      %v371 = vld [vmem:[#allocation2 + $0x150] sm:$0xff]
      %v372 = vld [vmem:[#allocation2 + $0x158] sm:$0xff]
      %v373 = vld [vmem:[#allocation2 + $0x160] sm:$0xff]
      %v374 = vld [vmem:[#allocation2 + $0x168] sm:$0xff]
      %v375 = vld [vmem:[#allocation2 + $0x170] sm:$0xff]
      %v376 = vld [vmem:[#allocation2 + $0x178] sm:$0xff]
      %v377 = vld [vmem:[#allocation2 + $0x180] sm:$0xff]
      %v378 = vld [vmem:[#allocation2 + $0x188] sm:$0xff]
      %v379 = vld [vmem:[#allocation2 + $0x190] sm:$0xff]
      %v380 = vld [vmem:[#allocation2 + $0x198] sm:$0xff]
      %v381 = vld [vmem:[#allocation2 + $0x1a0] sm:$0xff]
      %v382 = vld [vmem:[#allocation2 + $0x1a8] sm:$0xff]
      %v383 = vld [vmem:[#allocation2 + $0x1b0] sm:$0xff]
      %v384 = vld [vmem:[#allocation2 + $0x1b8] sm:$0xff]
      %v385 = vld [vmem:[#allocation2 + $0x1c0] sm:$0xff]
      %v386 = vld [vmem:[#allocation2 + $0x1c8] sm:$0xff]
      %v387 = vld [vmem:[#allocation2 + $0x1d0] sm:$0xff]
      %v388 = vld [vmem:[#allocation2 + $0x1d8] sm:$0xff]
      %v389 = vld [vmem:[#allocation2 + $0x1e0] sm:$0xff]
      %v390 = vld [vmem:[#allocation2 + $0x1e8] sm:$0xff]
      %v391 = vld [vmem:[#allocation2 + $0x1f0] sm:$0xff]
      %v392 = vld [vmem:[#allocation2 + $0x1f8] sm:$0xff]
      %v393 = vld [vmem:[%s236] sm:$0xf]
      %v394 = vld [vmem:[%s236 + $0x4] sm:$0xf]
      %v395 = vld [vmem:[%s236 + $0x8] sm:$0xf]
      %v396 = vld [vmem:[%s236 + $0xc] sm:$0xf]
      %v397 = vld [vmem:[%s236 + $0x10] sm:$0xf]
      %v398 = vld [vmem:[%s236 + $0x14] sm:$0xf]
      %v399 = vld [vmem:[%s236 + $0x18] sm:$0xf]
      %v400 = vld [vmem:[%s236 + $0x1c] sm:$0xf]
      %v401 = vld [vmem:[%s236 + $0x20] sm:$0xf]
      %v402 = vld [vmem:[%s236 + $0x24] sm:$0xf]
      %v403 = vld [vmem:[%s236 + $0x28] sm:$0xf]
      %v404 = vld [vmem:[%s236 + $0x2c] sm:$0xf]
      %v405 = vld [vmem:[%s236 + $0x30] sm:$0xf]
      %v406 = vld [vmem:[%s236 + $0x34] sm:$0xf]
      %v407 = vld [vmem:[%s236 + $0x38] sm:$0xf]
      %v408 = vld [vmem:[%s236 + $0x3c] sm:$0xf]
      %v409 = vld [vmem:[%s236 + $0x40] sm:$0xf]
      %v410 = vld [vmem:[%s236 + $0x44] sm:$0xf]
      %v411 = vld [vmem:[%s236 + $0x48] sm:$0xf]
      %v412 = vld [vmem:[%s236 + $0x4c] sm:$0xf]
      %v413 = vld [vmem:[%s236 + $0x50] sm:$0xf]
      %v414 = vld [vmem:[%s236 + $0x54] sm:$0xf]
      %v415 = vld [vmem:[%s236 + $0x58] sm:$0xf]
      %v416 = vld [vmem:[%s236 + $0x5c] sm:$0xf]
      %v417 = vld [vmem:[%s236 + $0x60] sm:$0xf]
      %v418 = vld [vmem:[%s236 + $0x64] sm:$0xf]
      %v419 = vld [vmem:[%s236 + $0x68] sm:$0xf]
      %v420 = vld [vmem:[%s236 + $0x6c] sm:$0xf]
      %v421 = vld [vmem:[%s236 + $0x70] sm:$0xf]
      %v422 = vld [vmem:[%s236 + $0x74] sm:$0xf]
      %v423 = vld [vmem:[%s236 + $0x78] sm:$0xf]
      %v424 = vld [vmem:[%s236 + $0x7c] sm:$0xf]
      %v425 = vld [vmem:[%s236 + $0x80] sm:$0xf]
      %v426 = vld [vmem:[%s236 + $0x84] sm:$0xf]
      %v427 = vld [vmem:[%s236 + $0x88] sm:$0xf]
      %v428 = vld [vmem:[%s236 + $0x8c] sm:$0xf]
      %v429 = vld [vmem:[%s236 + $0x90] sm:$0xf]
      %v430 = vld [vmem:[%s236 + $0x94] sm:$0xf]
      %v431 = vld [vmem:[%s236 + $0x98] sm:$0xf]
      %v432 = vld [vmem:[%s236 + $0x9c] sm:$0xf]
      %v433 = vld [vmem:[%s236 + $0xa0] sm:$0xf]
      %v434 = vld [vmem:[%s236 + $0xa4] sm:$0xf]
      %v435 = vld [vmem:[%s236 + $0xa8] sm:$0xf]
      %v436 = vld [vmem:[%s236 + $0xac] sm:$0xf]
      %v437 = vld [vmem:[%s236 + $0xb0] sm:$0xf]
      %v438 = vld [vmem:[%s236 + $0xb4] sm:$0xf]
      %v439 = vld [vmem:[%s236 + $0xb8] sm:$0xf]
      %v440 = vld [vmem:[%s236 + $0xbc] sm:$0xf]
      %v441 = vld [vmem:[%s236 + $0xc0] sm:$0xf]
      %v442 = vld [vmem:[%s236 + $0xc4] sm:$0xf]
      %v443 = vld [vmem:[%s236 + $0xc8] sm:$0xf]
      %v444 = vld [vmem:[%s236 + $0xcc] sm:$0xf]
      %v445 = vld [vmem:[%s236 + $0xd0] sm:$0xf]
      %v446 = vld [vmem:[%s236 + $0xd4] sm:$0xf]
      %v447 = vld [vmem:[%s236 + $0xd8] sm:$0xf]
      %v448 = vld [vmem:[%s236 + $0xdc] sm:$0xf]
      %v449 = vld [vmem:[%s236 + $0xe0] sm:$0xf]
      %v450 = vld [vmem:[%s236 + $0xe4] sm:$0xf]
      %v451 = vld [vmem:[%s236 + $0xe8] sm:$0xf]
      %v452 = vld [vmem:[%s236 + $0xec] sm:$0xf]
      %v453 = vld [vmem:[%s236 + $0xf0] sm:$0xf]
      %v454 = vld [vmem:[%s236 + $0xf4] sm:$0xf]
      %v455 = vld [vmem:[%s236 + $0xf8] sm:$0xf]
      %v456 = vld [vmem:[%s236 + $0xfc] sm:$0xf]
      %v457 = vld [vmem:[%s245] sm:$0xf]
      %v458 = vld [vmem:[%s245 + $0x4] sm:$0xf]
      %v459 = vld [vmem:[%s245 + $0x8] sm:$0xf]
      %v460 = vld [vmem:[%s245 + $0xc] sm:$0xf]
      %v461 = vld [vmem:[%s245 + $0x10] sm:$0xf]
      %v462 = vld [vmem:[%s245 + $0x14] sm:$0xf]
      %v527 = vunpack.c.l.b16 %v393
      %v528 = vunpack.c.l.b16 %v394
      %v529 = vunpack.c.l.b16 %v395
      %v530 = vunpack.c.l.b16 %v396
      %v531 = vunpack.c.l.b16 %v397
      %v532 = vunpack.c.l.b16 %v398
      %v533 = vunpack.c.l.b16 %v399
      %v534 = vunpack.c.l.b16 %v400
      %v535 = vunpack.c.l.b16 %v401
      %v536 = vunpack.c.l.b16 %v402
      %v537 = vunpack.c.l.b16 %v403
      %v538 = vunpack.c.l.b16 %v404
      %v539 = vunpack.c.l.b16 %v405
      %v540 = vunpack.c.l.b16 %v406
      %v541 = vunpack.c.l.b16 %v407
      %v542 = vunpack.c.l.b16 %v408
      %v543 = vunpack.c.l.b16 %v409
      %v544 = vunpack.c.l.b16 %v410
      %v545 = vunpack.c.l.b16 %v411
      %v546 = vunpack.c.l.b16 %v412
      %v547 = vunpack.c.l.b16 %v413
      %v548 = vunpack.c.l.b16 %v414
      %v549 = vunpack.c.l.b16 %v415
      %v550 = vunpack.c.l.b16 %v416
      %v551 = vunpack.c.l.b16 %v417
      %v552 = vunpack.c.l.b16 %v418
      %v553 = vunpack.c.l.b16 %v419
      %v554 = vunpack.c.l.b16 %v420
      %v555 = vunpack.c.l.b16 %v421
      %v556 = vunpack.c.l.b16 %v422
      %v557 = vunpack.c.l.b16 %v423
      %v558 = vunpack.c.l.b16 %v424
      %v559 = vunpack.c.l.b16 %v425
      %v560 = vunpack.c.l.b16 %v426
      %v561 = vunpack.c.l.b16 %v427
      %v562 = vunpack.c.l.b16 %v428
      %v563 = vunpack.c.l.b16 %v429
      %v564 = vunpack.c.l.b16 %v430
      %v565 = vunpack.c.l.b16 %v431
      %v566 = vunpack.c.l.b16 %v432
      %v567 = vunpack.c.l.b16 %v433
      %v568 = vunpack.c.l.b16 %v434
      %v569 = vunpack.c.l.b16 %v435
      %v570 = vunpack.c.l.b16 %v436
      %v571 = vunpack.c.l.b16 %v437
      %v572 = vunpack.c.l.b16 %v438
      %v573 = vunpack.c.l.b16 %v439
      %v574 = vunpack.c.l.b16 %v440
      %v575 = vunpack.c.l.b16 %v441
      %v576 = vunpack.c.l.b16 %v442
      %v577 = vunpack.c.l.b16 %v443
      %v578 = vunpack.c.l.b16 %v444
      %v579 = vunpack.c.l.b16 %v445
      %v580 = vunpack.c.l.b16 %v446
      %v581 = vunpack.c.l.b16 %v447
      %v582 = vunpack.c.l.b16 %v448
      %v583 = vunpack.c.l.b16 %v449
      %v584 = vunpack.c.l.b16 %v450
      %v585 = vunpack.c.l.b16 %v451
      %v586 = vunpack.c.l.b16 %v452
      %v587 = vunpack.c.l.b16 %v453
      %v588 = vunpack.c.l.b16 %v454
      %v589 = vunpack.c.l.b16 %v455
      %v590 = vunpack.c.l.b16 %v456
      %v591 = vpack.c.b16 %v528, %v527
      %v592 = vpack.c.b16 %v530, %v529
      %v593 = vpack.c.b16 %v532, %v531
      %v594 = vpack.c.b16 %v534, %v533
      %v595 = vpack.c.b16 %v536, %v535
      %v596 = vpack.c.b16 %v538, %v537
      %v597 = vpack.c.b16 %v540, %v539
      %v598 = vpack.c.b16 %v542, %v541
      %v599 = vpack.c.b16 %v544, %v543
      %v600 = vpack.c.b16 %v546, %v545
      %v601 = vpack.c.b16 %v548, %v547
      %v602 = vpack.c.b16 %v550, %v549
      %v603 = vpack.c.b16 %v552, %v551
      %v604 = vpack.c.b16 %v554, %v553
      %v605 = vpack.c.b16 %v556, %v555
      %v606 = vpack.c.b16 %v558, %v557
      %v607 = vpack.c.b16 %v560, %v559
      %v608 = vpack.c.b16 %v562, %v561
      %v609 = vpack.c.b16 %v564, %v563
      %v610 = vpack.c.b16 %v566, %v565
      %v611 = vpack.c.b16 %v568, %v567
      %v612 = vpack.c.b16 %v570, %v569
      %v613 = vpack.c.b16 %v572, %v571
      %v614 = vpack.c.b16 %v574, %v573
      %v615 = vpack.c.b16 %v576, %v575
      %v616 = vpack.c.b16 %v578, %v577
      %v617 = vpack.c.b16 %v580, %v579
      %v618 = vpack.c.b16 %v582, %v581
      %v619 = vpack.c.b16 %v584, %v583
      %v620 = vpack.c.b16 %v586, %v585
      %v621 = vpack.c.b16 %v588, %v587
      %v622 = vpack.c.b16 %v590, %v589
      %v629 = vunpack.c.l.b16 %v457
      %v630 = vunpack.c.l.b16 %v458
      %v631 = vunpack.c.l.b16 %v459
      %v632 = vunpack.c.l.b16 %v460
      %v633 = vunpack.c.l.b16 %v461
      %v634 = vunpack.c.l.b16 %v462
      %v635 = vpack.c.b16 %v630, %v629
      %v636 = vpack.c.b16 %v632, %v631
      %v637 = vpack.c.b16 %v634, %v633
      %vm641 = vcmask 392192
      %v643 = vsel %vm641, %v591, 0
      %v646 = vsel %vm641, %v592, 0
      %v649 = vsel %vm641, %v593, 0
      %v652 = vsel %vm641, %v594, 0
      %v655 = vsel %vm641, %v595, 0
      %v658 = vsel %vm641, %v596, 0
      %v661 = vsel %vm641, %v597, 0
      %v664 = vsel %vm641, %v598, 0
      %v667 = vsel %vm641, %v599, 0
      %v670 = vsel %vm641, %v600, 0
      %v673 = vsel %vm641, %v601, 0
      %v676 = vsel %vm641, %v602, 0
      %v679 = vsel %vm641, %v603, 0
      %v682 = vsel %vm641, %v604, 0
      %v685 = vsel %vm641, %v605, 0
      %v688 = vsel %vm641, %v606, 0
      %v691 = vsel %vm641, %v607, 0
      %v694 = vsel %vm641, %v608, 0
      %v697 = vsel %vm641, %v609, 0
      %v700 = vsel %vm641, %v610, 0
      %v703 = vsel %vm641, %v611, 0
      %v706 = vsel %vm641, %v612, 0
      %v709 = vsel %vm641, %v613, 0
      %v712 = vsel %vm641, %v614, 0
      %v715 = vsel %vm641, %v615, 0
      %v718 = vsel %vm641, %v616, 0
      %v721 = vsel %vm641, %v617, 0
      %v724 = vsel %vm641, %v618, 0
      %v727 = vsel %vm641, %v619, 0
      %v730 = vsel %vm641, %v620, 0
      %v733 = vsel %vm641, %v621, 0
      %v736 = vsel %vm641, %v622, 0
      %738 = vmatprep.subr.bf16.mxu0 0
      %739 = vmatpush1.bf16.msra.mxu0 %v635
      %740 = vmatprep.subr.bf16.mxu0 0
      %741 = vmatpush1.bf16.msra.mxu0 %v636
      %742 = vmatprep.subr.bf16.mxu0 0
      %743 = vmatpush1.bf16.msra.mxu0 %v637
      %744 = vmatprep.subr.bf16.mxu0 0
      %745 = vmatpush1.bf16.msra.mxu0 0
      %746 = vmatprep.subr.bf16.mxu0 0
      %747 = vmatpush1.bf16.msra.mxu0 0
      %748 = vmatprep.subr.bf16.mxu0 0
      %749 = vmatpush1.bf16.msra.mxu0 0
      %750 = vmatprep.subr.bf16.mxu0 0
      %751 = vmatpush1.bf16.msra.mxu0 0
      %752 = vmatprep.subr.bf16.mxu0 0
      %753 = vmatpush1.bf16.msra.mxu0 0
      %754 = vmatprep.subr.bf16.mxu0 0
      %755 = vmatpush1.bf16.msra.mxu0 0
      %756 = vmatprep.subr.bf16.mxu0 0
      %757 = vmatpush1.bf16.msra.mxu0 0
      %758 = vmatprep.subr.bf16.mxu0 0
      %759 = vmatpush1.bf16.msra.mxu0 0
      %760 = vmatprep.subr.bf16.mxu0 0
      %761 = vmatpush1.bf16.msra.mxu0 0
      %762 = vmatprep.subr.bf16.mxu0 0
      %763 = vmatpush1.bf16.msra.mxu0 0
      %764 = vmatprep.subr.bf16.mxu0 0
      %765 = vmatpush1.bf16.msra.mxu0 0
      %766 = vmatprep.subr.bf16.mxu0 0
      %767 = vmatpush1.bf16.msra.mxu0 0
      %768 = vmatprep.subr.bf16.mxu0 0
      %769 = vmatpush1.bf16.msra.mxu0 0
      %770 = vmatprep.mubr.bf16.mxu0 0
      %771 = vmatmul.mubr.bf16.gmra.mrb[0].mxu0 %v643
      %v772 = vpop.f32.mrb[0].mxu0
      %v773 = vadd.f32 0.0, %v772
      %v774 = vpop.f32.mrb[0].mxu0
      %v775 = vpop.f32.mrb[0].mxu0
      %v776 = vadd.f32 0.0, %v775
      %v777 = vpop.f32.mrb[0].mxu0
      %778 = vmatprep.mubr.bf16.mxu0 0
      %779 = vmatmul.mubr.bf16.gmra.mrb[0].mxu0 %v646
      %v780 = vpop.f32.mrb[0].mxu0
      %v781 = vadd.f32 0.0, %v780
      %v782 = vpop.f32.mrb[0].mxu0
      %v783 = vpop.f32.mrb[0].mxu0
      %v784 = vadd.f32 0.0, %v783
      %v785 = vpop.f32.mrb[0].mxu0
      %786 = vmatprep.mubr.bf16.mxu0 0
      %787 = vmatmul.mubr.bf16.gmra.mrb[0].mxu0 %v649
      %v788 = vpop.f32.mrb[0].mxu0
      %v789 = vadd.f32 0.0, %v788
      %v790 = vpop.f32.mrb[0].mxu0
      %v791 = vpop.f32.mrb[0].mxu0
      %v792 = vadd.f32 0.0, %v791
      %v793 = vpop.f32.mrb[0].mxu0
      %794 = vmatprep.mubr.bf16.mxu0 0
      %795 = vmatmul.mubr.bf16.gmra.mrb[0].mxu0 %v652
      %v796 = vpop.f32.mrb[0].mxu0
      %v797 = vadd.f32 0.0, %v796
      %v798 = vpop.f32.mrb[0].mxu0
      %v799 = vpop.f32.mrb[0].mxu0
      %v800 = vadd.f32 0.0, %v799
      %v801 = vpop.f32.mrb[0].mxu0
      %802 = vmatprep.mubr.bf16.mxu0 0
      %803 = vmatmul.mubr.bf16.gmra.mrb[0].mxu0 %v655
      %v804 = vpop.f32.mrb[0].mxu0
      %v805 = vadd.f32 0.0, %v804
      %v806 = vpop.f32.mrb[0].mxu0
      %v807 = vpop.f32.mrb[0].mxu0
      %v808 = vadd.f32 0.0, %v807
      %v809 = vpop.f32.mrb[0].mxu0
      %810 = vmatprep.mubr.bf16.mxu0 0
      %811 = vmatmul.mubr.bf16.gmra.mrb[0].mxu0 %v658
      %v812 = vpop.f32.mrb[0].mxu0
      %v813 = vadd.f32 0.0, %v812
      %v814 = vpop.f32.mrb[0].mxu0
      %v815 = vpop.f32.mrb[0].mxu0
      %v816 = vadd.f32 0.0, %v815
      %v817 = vpop.f32.mrb[0].mxu0
      %818 = vmatprep.mubr.bf16.mxu0 0
      %819 = vmatmul.mubr.bf16.gmra.mrb[0].mxu0 %v661
      %v820 = vpop.f32.mrb[0].mxu0
      %v821 = vadd.f32 0.0, %v820
      %v822 = vpop.f32.mrb[0].mxu0
      %v823 = vpop.f32.mrb[0].mxu0
      %v824 = vadd.f32 0.0, %v823
      %v825 = vpop.f32.mrb[0].mxu0
      %826 = vmatprep.mubr.bf16.mxu0 0
      %827 = vmatmul.mubr.bf16.gmra.mrb[0].mxu0 %v664
      %v828 = vpop.f32.mrb[0].mxu0
      %v829 = vadd.f32 0.0, %v828
      %v830 = vpop.f32.mrb[0].mxu0
      %v831 = vpop.f32.mrb[0].mxu0
      %v832 = vadd.f32 0.0, %v831
      %v833 = vpop.f32.mrb[0].mxu0
      %834 = vmatprep.mubr.bf16.mxu0 0
      %835 = vmatmul.mubr.bf16.gmra.mrb[0].mxu0 %v667
      %v836 = vpop.f32.mrb[0].mxu0
      %v837 = vadd.f32 0.0, %v836
      %v838 = vpop.f32.mrb[0].mxu0
      %v839 = vpop.f32.mrb[0].mxu0
      %v840 = vadd.f32 0.0, %v839
      %v841 = vpop.f32.mrb[0].mxu0
      %842 = vmatprep.mubr.bf16.mxu0 0
      %843 = vmatmul.mubr.bf16.gmra.mrb[0].mxu0 %v670
      %v844 = vpop.f32.mrb[0].mxu0
      %v845 = vadd.f32 0.0, %v844
      %v846 = vpop.f32.mrb[0].mxu0
      %v847 = vpop.f32.mrb[0].mxu0
      %v848 = vadd.f32 0.0, %v847
      %v849 = vpop.f32.mrb[0].mxu0
      %850 = vmatprep.mubr.bf16.mxu0 0
      %851 = vmatmul.mubr.bf16.gmra.mrb[0].mxu0 %v673
      %v852 = vpop.f32.mrb[0].mxu0
      %v853 = vadd.f32 0.0, %v852
      %v854 = vpop.f32.mrb[0].mxu0
      %v855 = vpop.f32.mrb[0].mxu0
      %v856 = vadd.f32 0.0, %v855
      %v857 = vpop.f32.mrb[0].mxu0
      %858 = vmatprep.mubr.bf16.mxu0 0
      %859 = vmatmul.mubr.bf16.gmra.mrb[0].mxu0 %v676
      %v860 = vpop.f32.mrb[0].mxu0
      %v861 = vadd.f32 0.0, %v860
      %v862 = vpop.f32.mrb[0].mxu0
      %v863 = vpop.f32.mrb[0].mxu0
      %v864 = vadd.f32 0.0, %v863
      %v865 = vpop.f32.mrb[0].mxu0
      %866 = vmatprep.mubr.bf16.mxu0 0
      %867 = vmatmul.mubr.bf16.gmra.mrb[0].mxu0 %v679
      %v868 = vpop.f32.mrb[0].mxu0
      %v869 = vadd.f32 0.0, %v868
      %v870 = vpop.f32.mrb[0].mxu0
      %v871 = vpop.f32.mrb[0].mxu0
      %v872 = vadd.f32 0.0, %v871
      %v873 = vpop.f32.mrb[0].mxu0
      %874 = vmatprep.mubr.bf16.mxu0 0
      %875 = vmatmul.mubr.bf16.gmra.mrb[0].mxu0 %v682
      %v876 = vpop.f32.mrb[0].mxu0
      %v877 = vadd.f32 0.0, %v876
      %v878 = vpop.f32.mrb[0].mxu0
      %v879 = vpop.f32.mrb[0].mxu0
      %v880 = vadd.f32 0.0, %v879
      %v881 = vpop.f32.mrb[0].mxu0
      %882 = vmatprep.mubr.bf16.mxu0 0
      %883 = vmatmul.mubr.bf16.gmra.mrb[0].mxu0 %v685
      %v884 = vpop.f32.mrb[0].mxu0
      %v885 = vadd.f32 0.0, %v884
      %v886 = vpop.f32.mrb[0].mxu0
      %v887 = vpop.f32.mrb[0].mxu0
      %v888 = vadd.f32 0.0, %v887
      %v889 = vpop.f32.mrb[0].mxu0
      %890 = vmatprep.mubr.bf16.mxu0 0
      %891 = vmatmul.mubr.bf16.gmra.mrb[0].mxu0 %v688
      %v892 = vpop.f32.mrb[0].mxu0
      %v893 = vadd.f32 0.0, %v892
      %v894 = vpop.f32.mrb[0].mxu0
      %v895 = vpop.f32.mrb[0].mxu0
      %v896 = vadd.f32 0.0, %v895
      %v897 = vpop.f32.mrb[0].mxu0
      %898 = vmatprep.mubr.bf16.mxu0 0
      %899 = vmatmul.mubr.bf16.gmra.mrb[0].mxu0 %v691
      %v900 = vpop.f32.mrb[0].mxu0
      %v901 = vadd.f32 0.0, %v900
      %v902 = vpop.f32.mrb[0].mxu0
      %v903 = vpop.f32.mrb[0].mxu0
      %v904 = vadd.f32 0.0, %v903
      %v905 = vpop.f32.mrb[0].mxu0
      %906 = vmatprep.mubr.bf16.mxu0 0
      %907 = vmatmul.mubr.bf16.gmra.mrb[0].mxu0 %v694
      %v908 = vpop.f32.mrb[0].mxu0
      %v909 = vadd.f32 0.0, %v908
      %v910 = vpop.f32.mrb[0].mxu0
      %v911 = vpop.f32.mrb[0].mxu0
      %v912 = vadd.f32 0.0, %v911
      %v913 = vpop.f32.mrb[0].mxu0
      %914 = vmatprep.mubr.bf16.mxu0 0
      %915 = vmatmul.mubr.bf16.gmra.mrb[0].mxu0 %v697
      %v916 = vpop.f32.mrb[0].mxu0
      %v917 = vadd.f32 0.0, %v916
      %v918 = vpop.f32.mrb[0].mxu0
      %v919 = vpop.f32.mrb[0].mxu0
      %v920 = vadd.f32 0.0, %v919
      %v921 = vpop.f32.mrb[0].mxu0
      %922 = vmatprep.mubr.bf16.mxu0 0
      %923 = vmatmul.mubr.bf16.gmra.mrb[0].mxu0 %v700
      %v924 = vpop.f32.mrb[0].mxu0
      %v925 = vadd.f32 0.0, %v924
      %v926 = vpop.f32.mrb[0].mxu0
      %v927 = vpop.f32.mrb[0].mxu0
      %v928 = vadd.f32 0.0, %v927
      %v929 = vpop.f32.mrb[0].mxu0
      %930 = vmatprep.mubr.bf16.mxu0 0
      %931 = vmatmul.mubr.bf16.gmra.mrb[0].mxu0 %v703
      %v932 = vpop.f32.mrb[0].mxu0
      %v933 = vadd.f32 0.0, %v932
      %v934 = vpop.f32.mrb[0].mxu0
      %v935 = vpop.f32.mrb[0].mxu0
      %v936 = vadd.f32 0.0, %v935
      %v937 = vpop.f32.mrb[0].mxu0
      %938 = vmatprep.mubr.bf16.mxu0 0
      %939 = vmatmul.mubr.bf16.gmra.mrb[0].mxu0 %v706
      %v940 = vpop.f32.mrb[0].mxu0
      %v941 = vadd.f32 0.0, %v940
      %v942 = vpop.f32.mrb[0].mxu0
      %v943 = vpop.f32.mrb[0].mxu0
      %v944 = vadd.f32 0.0, %v943
      %v945 = vpop.f32.mrb[0].mxu0
      %946 = vmatprep.mubr.bf16.mxu0 0
      %947 = vmatmul.mubr.bf16.gmra.mrb[0].mxu0 %v709
      %v948 = vpop.f32.mrb[0].mxu0
      %v949 = vadd.f32 0.0, %v948
      %v950 = vpop.f32.mrb[0].mxu0
      %v951 = vpop.f32.mrb[0].mxu0
      %v952 = vadd.f32 0.0, %v951
      %v953 = vpop.f32.mrb[0].mxu0
      %954 = vmatprep.mubr.bf16.mxu0 0
      %955 = vmatmul.mubr.bf16.gmra.mrb[0].mxu0 %v712
      %v956 = vpop.f32.mrb[0].mxu0
      %v957 = vadd.f32 0.0, %v956
      %v958 = vpop.f32.mrb[0].mxu0
      %v959 = vpop.f32.mrb[0].mxu0
      %v960 = vadd.f32 0.0, %v959
      %v961 = vpop.f32.mrb[0].mxu0
      %962 = vmatprep.mubr.bf16.mxu0 0
      %963 = vmatmul.mubr.bf16.gmra.mrb[0].mxu0 %v715
      %v964 = vpop.f32.mrb[0].mxu0
      %v965 = vadd.f32 0.0, %v964
      %v966 = vpop.f32.mrb[0].mxu0
      %v967 = vpop.f32.mrb[0].mxu0
      %v968 = vadd.f32 0.0, %v967
      %v969 = vpop.f32.mrb[0].mxu0
      %970 = vmatprep.mubr.bf16.mxu0 0
      %971 = vmatmul.mubr.bf16.gmra.mrb[0].mxu0 %v718
      %v972 = vpop.f32.mrb[0].mxu0
      %v973 = vadd.f32 0.0, %v972
      %v974 = vpop.f32.mrb[0].mxu0
      %v975 = vpop.f32.mrb[0].mxu0
      %v976 = vadd.f32 0.0, %v975
      %v977 = vpop.f32.mrb[0].mxu0
      %978 = vmatprep.mubr.bf16.mxu0 0
      %979 = vmatmul.mubr.bf16.gmra.mrb[0].mxu0 %v721
      %v980 = vpop.f32.mrb[0].mxu0
      %v981 = vadd.f32 0.0, %v980
      %v982 = vpop.f32.mrb[0].mxu0
      %v983 = vpop.f32.mrb[0].mxu0
      %v984 = vadd.f32 0.0, %v983
      %v985 = vpop.f32.mrb[0].mxu0
      %986 = vmatprep.mubr.bf16.mxu0 0
      %987 = vmatmul.mubr.bf16.gmra.mrb[0].mxu0 %v724
      %v988 = vpop.f32.mrb[0].mxu0
      %v989 = vadd.f32 0.0, %v988
      %v990 = vpop.f32.mrb[0].mxu0
      %v991 = vpop.f32.mrb[0].mxu0
      %v992 = vadd.f32 0.0, %v991
      %v993 = vpop.f32.mrb[0].mxu0
      %994 = vmatprep.mubr.bf16.mxu0 0
      %995 = vmatmul.mubr.bf16.gmra.mrb[0].mxu0 %v727
      %v996 = vpop.f32.mrb[0].mxu0
      %v997 = vadd.f32 0.0, %v996
      %v998 = vpop.f32.mrb[0].mxu0
      %v999 = vpop.f32.mrb[0].mxu0
      %v1000 = vadd.f32 0.0, %v999
      %v1001 = vpop.f32.mrb[0].mxu0
      %1002 = vmatprep.mubr.bf16.mxu0 0
      %1003 = vmatmul.mubr.bf16.gmra.mrb[0].mxu0 %v730
      %v1004 = vpop.f32.mrb[0].mxu0
      %v1005 = vadd.f32 0.0, %v1004
      %v1006 = vpop.f32.mrb[0].mxu0
      %v1007 = vpop.f32.mrb[0].mxu0
      %v1008 = vadd.f32 0.0, %v1007
      %v1009 = vpop.f32.mrb[0].mxu0
      %1010 = vmatprep.mubr.bf16.mxu0 0
      %1011 = vmatmul.mubr.bf16.gmra.mrb[0].mxu0 %v733
      %v1012 = vpop.f32.mrb[0].mxu0
      %v1013 = vadd.f32 0.0, %v1012
      %v1014 = vpop.f32.mrb[0].mxu0
      %v1015 = vpop.f32.mrb[0].mxu0
      %v1016 = vadd.f32 0.0, %v1015
      %v1017 = vpop.f32.mrb[0].mxu0
      %1018 = vmatprep.mubr.bf16.mxu0 0
      %1019 = vmatmul.mubr.bf16.gmra.mrb[0].mxu0 %v736
      %v1020 = vpop.f32.mrb[0].mxu0
      %v1021 = vadd.f32 0.0, %v1020
      %v1022 = vpop.f32.mrb[0].mxu0
      %v1023 = vpop.f32.mrb[0].mxu0
      %v1024 = vadd.f32 0.0, %v1023
      %v1025 = vpop.f32.mrb[0].mxu0
      %1026 = vdwg.mxu0
      %v1027 = vadd.f32 %v329, %v773
      %v1028 = vadd.f32 %v330, %v776
      %v1029 = vadd.f32 %v331, %v781
      %v1030 = vadd.f32 %v332, %v784
      %v1031 = vadd.f32 %v333, %v789
      %v1032 = vadd.f32 %v334, %v792
      %v1033 = vadd.f32 %v335, %v797
      %v1034 = vadd.f32 %v336, %v800
      %v1035 = vadd.f32 %v337, %v805
      %v1036 = vadd.f32 %v338, %v808
      %v1037 = vadd.f32 %v339, %v813
      %v1038 = vadd.f32 %v340, %v816
      %v1039 = vadd.f32 %v341, %v821
      %v1040 = vadd.f32 %v342, %v824
      %v1041 = vadd.f32 %v343, %v829
      %v1042 = vadd.f32 %v344, %v832
      %v1043 = vadd.f32 %v345, %v837
      %v1044 = vadd.f32 %v346, %v840
      %v1045 = vadd.f32 %v347, %v845
      %v1046 = vadd.f32 %v348, %v848
      %v1047 = vadd.f32 %v349, %v853
      %v1048 = vadd.f32 %v350, %v856
      %v1049 = vadd.f32 %v351, %v861
      %v1050 = vadd.f32 %v352, %v864
      %v1051 = vadd.f32 %v353, %v869
      %v1052 = vadd.f32 %v354, %v872
      %v1053 = vadd.f32 %v355, %v877
      %v1054 = vadd.f32 %v356, %v880
      %v1055 = vadd.f32 %v357, %v885
      %v1056 = vadd.f32 %v358, %v888
      %v1057 = vadd.f32 %v359, %v893
      %v1058 = vadd.f32 %v360, %v896
      %v1059 = vadd.f32 %v361, %v901
      %v1060 = vadd.f32 %v362, %v904
      %v1061 = vadd.f32 %v363, %v909
      %v1062 = vadd.f32 %v364, %v912
      %v1063 = vadd.f32 %v365, %v917
      %v1064 = vadd.f32 %v366, %v920
      %v1065 = vadd.f32 %v367, %v925
      %v1066 = vadd.f32 %v368, %v928
      %v1067 = vadd.f32 %v369, %v933
      %v1068 = vadd.f32 %v370, %v936
      %v1069 = vadd.f32 %v371, %v941
      %v1070 = vadd.f32 %v372, %v944
      %v1071 = vadd.f32 %v373, %v949
      %v1072 = vadd.f32 %v374, %v952
      %v1073 = vadd.f32 %v375, %v957
      %v1074 = vadd.f32 %v376, %v960
      %v1075 = vadd.f32 %v377, %v965
      %v1076 = vadd.f32 %v378, %v968
      %v1077 = vadd.f32 %v379, %v973
      %v1078 = vadd.f32 %v380, %v976
      %v1079 = vadd.f32 %v381, %v981
      %v1080 = vadd.f32 %v382, %v984
      %v1081 = vadd.f32 %v383, %v989
      %v1082 = vadd.f32 %v384, %v992
      %v1083 = vadd.f32 %v385, %v997
      %v1084 = vadd.f32 %v386, %v1000
      %v1085 = vadd.f32 %v387, %v1005
      %v1086 = vadd.f32 %v388, %v1008
      %v1087 = vadd.f32 %v389, %v1013
      %v1088 = vadd.f32 %v390, %v1016
      %v1089 = vadd.f32 %v391, %v1021
      %v1090 = vadd.f32 %v392, %v1024
      %vm1091 = vcmask 261120
      %1092 = vst.msk [vmem:[#allocation2] sm:$0xff] %vm1091, %v1027
      %1093 = vst.msk [vmem:[#allocation2 + $0x8] sm:$0xff] %vm1091, %v1028
      %1094 = vst.msk [vmem:[#allocation2 + $0x10] sm:$0xff] %vm1091, %v1029
      %1095 = vst.msk [vmem:[#allocation2 + $0x18] sm:$0xff] %vm1091, %v1030
      %1096 = vst.msk [vmem:[#allocation2 + $0x20] sm:$0xff] %vm1091, %v1031
      %1097 = vst.msk [vmem:[#allocation2 + $0x28] sm:$0xff] %vm1091, %v1032
      %1098 = vst.msk [vmem:[#allocation2 + $0x30] sm:$0xff] %vm1091, %v1033
      %1099 = vst.msk [vmem:[#allocation2 + $0x38] sm:$0xff] %vm1091, %v1034
      %1100 = vst.msk [vmem:[#allocation2 + $0x40] sm:$0xff] %vm1091, %v1035
      %1101 = vst.msk [vmem:[#allocation2 + $0x48] sm:$0xff] %vm1091, %v1036
      %1102 = vst.msk [vmem:[#allocation2 + $0x50] sm:$0xff] %vm1091, %v1037
      %1103 = vst.msk [vmem:[#allocation2 + $0x58] sm:$0xff] %vm1091, %v1038
      %1104 = vst.msk [vmem:[#allocation2 + $0x60] sm:$0xff] %vm1091, %v1039
      %1105 = vst.msk [vmem:[#allocation2 + $0x68] sm:$0xff] %vm1091, %v1040
      %1106 = vst.msk [vmem:[#allocation2 + $0x70] sm:$0xff] %vm1091, %v1041
      %1107 = vst.msk [vmem:[#allocation2 + $0x78] sm:$0xff] %vm1091, %v1042
      %1108 = vst.msk [vmem:[#allocation2 + $0x80] sm:$0xff] %vm1091, %v1043
      %1109 = vst.msk [vmem:[#allocation2 + $0x88] sm:$0xff] %vm1091, %v1044
      %1110 = vst.msk [vmem:[#allocation2 + $0x90] sm:$0xff] %vm1091, %v1045
      %1111 = vst.msk [vmem:[#allocation2 + $0x98] sm:$0xff] %vm1091, %v1046
      %1112 = vst.msk [vmem:[#allocation2 + $0xa0] sm:$0xff] %vm1091, %v1047
      %1113 = vst.msk [vmem:[#allocation2 + $0xa8] sm:$0xff] %vm1091, %v1048
      %1114 = vst.msk [vmem:[#allocation2 + $0xb0] sm:$0xff] %vm1091, %v1049
      %1115 = vst.msk [vmem:[#allocation2 + $0xb8] sm:$0xff] %vm1091, %v1050
      %1116 = vst.msk [vmem:[#allocation2 + $0xc0] sm:$0xff] %vm1091, %v1051
      %1117 = vst.msk [vmem:[#allocation2 + $0xc8] sm:$0xff] %vm1091, %v1052
      %1118 = vst.msk [vmem:[#allocation2 + $0xd0] sm:$0xff] %vm1091, %v1053
      %1119 = vst.msk [vmem:[#allocation2 + $0xd8] sm:$0xff] %vm1091, %v1054
      %1120 = vst.msk [vmem:[#allocation2 + $0xe0] sm:$0xff] %vm1091, %v1055
      %1121 = vst.msk [vmem:[#allocation2 + $0xe8] sm:$0xff] %vm1091, %v1056
      %1122 = vst.msk [vmem:[#allocation2 + $0xf0] sm:$0xff] %vm1091, %v1057
      %1123 = vst.msk [vmem:[#allocation2 + $0xf8] sm:$0xff] %vm1091, %v1058
      %1124 = vst.msk [vmem:[#allocation2 + $0x100] sm:$0xff] %vm1091, %v1059
      %1125 = vst.msk [vmem:[#allocation2 + $0x108] sm:$0xff] %vm1091, %v1060
      %1126 = vst.msk [vmem:[#allocation2 + $0x110] sm:$0xff] %vm1091, %v1061
      %1127 = vst.msk [vmem:[#allocation2 + $0x118] sm:$0xff] %vm1091, %v1062
      %1128 = vst.msk [vmem:[#allocation2 + $0x120] sm:$0xff] %vm1091, %v1063
      %1129 = vst.msk [vmem:[#allocation2 + $0x128] sm:$0xff] %vm1091, %v1064
      %1130 = vst.msk [vmem:[#allocation2 + $0x130] sm:$0xff] %vm1091, %v1065
      %1131 = vst.msk [vmem:[#allocation2 + $0x138] sm:$0xff] %vm1091, %v1066
      %1132 = vst.msk [vmem:[#allocation2 + $0x140] sm:$0xff] %vm1091, %v1067
      %1133 = vst.msk [vmem:[#allocation2 + $0x148] sm:$0xff] %vm1091, %v1068
      %1134 = vst.msk [vmem:[#allocation2 + $0x150] sm:$0xff] %vm1091, %v1069
      %1135 = vst.msk [vmem:[#allocation2 + $0x158] sm:$0xff] %vm1091, %v1070
      %1136 = vst.msk [vmem:[#allocation2 + $0x160] sm:$0xff] %vm1091, %v1071
      %1137 = vst.msk [vmem:[#allocation2 + $0x168] sm:$0xff] %vm1091, %v1072
      %1138 = vst.msk [vmem:[#allocation2 + $0x170] sm:$0xff] %vm1091, %v1073
      %1139 = vst.msk [vmem:[#allocation2 + $0x178] sm:$0xff] %vm1091, %v1074
      %1140 = vst.msk [vmem:[#allocation2 + $0x180] sm:$0xff] %vm1091, %v1075
      %1141 = vst.msk [vmem:[#allocation2 + $0x188] sm:$0xff] %vm1091, %v1076
      %1142 = vst.msk [vmem:[#allocation2 + $0x190] sm:$0xff] %vm1091, %v1077
      %1143 = vst.msk [vmem:[#allocation2 + $0x198] sm:$0xff] %vm1091, %v1078
      %1144 = vst.msk [vmem:[#allocation2 + $0x1a0] sm:$0xff] %vm1091, %v1079
      %1145 = vst.msk [vmem:[#allocation2 + $0x1a8] sm:$0xff] %vm1091, %v1080
      %1146 = vst.msk [vmem:[#allocation2 + $0x1b0] sm:$0xff] %vm1091, %v1081
      %1147 = vst.msk [vmem:[#allocation2 + $0x1b8] sm:$0xff] %vm1091, %v1082
      %1148 = vst.msk [vmem:[#allocation2 + $0x1c0] sm:$0xff] %vm1091, %v1083
      %1149 = vst.msk [vmem:[#allocation2 + $0x1c8] sm:$0xff] %vm1091, %v1084
      %1150 = vst.msk [vmem:[#allocation2 + $0x1d0] sm:$0xff] %vm1091, %v1085
      %1151 = vst.msk [vmem:[#allocation2 + $0x1d8] sm:$0xff] %vm1091, %v1086
      %1152 = vst.msk [vmem:[#allocation2 + $0x1e0] sm:$0xff] %vm1091, %v1087
      %1153 = vst.msk [vmem:[#allocation2 + $0x1e8] sm:$0xff] %vm1091, %v1088
      %1154 = vst.msk [vmem:[#allocation2 + $0x1f0] sm:$0xff] %vm1091, %v1089
      %1155 = vst.msk [vmem:[#allocation2 + $0x1f8] sm:$0xff] %vm1091, %v1090
      // Predicated region
      $region37: #{_pallas_matmul_impl.1} parent=31 // pred_check
        %p1156 = pneg %p260
      $region38: #{_pallas_matmul_impl.1} parent=31 // pred_check_branch
        %1158 = sbr.rel (%p1156) target = $region40
      $region39: #{_pallas_matmul_impl.1} parent=31 // pred_region
        %v1159 = vld [vmem:[#allocation2] sm:$0xff]
        %v1160 = vld [vmem:[#allocation2 + $0x8] sm:$0xff]
        %v1161 = vld [vmem:[#allocation2 + $0x10] sm:$0xff]
        %v1162 = vld [vmem:[#allocation2 + $0x18] sm:$0xff]
        %v1163 = vld [vmem:[#allocation2 + $0x20] sm:$0xff]
        %v1164 = vld [vmem:[#allocation2 + $0x28] sm:$0xff]
        %v1165 = vld [vmem:[#allocation2 + $0x30] sm:$0xff]
        %v1166 = vld [vmem:[#allocation2 + $0x38] sm:$0xff]
        %v1167 = vld [vmem:[#allocation2 + $0x40] sm:$0xff]
        %v1168 = vld [vmem:[#allocation2 + $0x48] sm:$0xff]
        %v1169 = vld [vmem:[#allocation2 + $0x50] sm:$0xff]
        %v1170 = vld [vmem:[#allocation2 + $0x58] sm:$0xff]
        %v1171 = vld [vmem:[#allocation2 + $0x60] sm:$0xff]
        %v1172 = vld [vmem:[#allocation2 + $0x68] sm:$0xff]
        %v1173 = vld [vmem:[#allocation2 + $0x70] sm:$0xff]
        %v1174 = vld [vmem:[#allocation2 + $0x78] sm:$0xff]
        %v1175 = vld [vmem:[#allocation2 + $0x80] sm:$0xff]
        %v1176 = vld [vmem:[#allocation2 + $0x88] sm:$0xff]
        %v1177 = vld [vmem:[#allocation2 + $0x90] sm:$0xff]
        %v1178 = vld [vmem:[#allocation2 + $0x98] sm:$0xff]
        %v1179 = vld [vmem:[#allocation2 + $0xa0] sm:$0xff]
        %v1180 = vld [vmem:[#allocation2 + $0xa8] sm:$0xff]
        %v1181 = vld [vmem:[#allocation2 + $0xb0] sm:$0xff]
        %v1182 = vld [vmem:[#allocation2 + $0xb8] sm:$0xff]
        %v1183 = vld [vmem:[#allocation2 + $0xc0] sm:$0xff]
        %v1184 = vld [vmem:[#allocation2 + $0xc8] sm:$0xff]
        %v1185 = vld [vmem:[#allocation2 + $0xd0] sm:$0xff]
        %v1186 = vld [vmem:[#allocation2 + $0xd8] sm:$0xff]
        %v1187 = vld [vmem:[#allocation2 + $0xe0] sm:$0xff]
        %v1188 = vld [vmem:[#allocation2 + $0xe8] sm:$0xff]
        %v1189 = vld [vmem:[#allocation2 + $0xf0] sm:$0xff]
        %v1190 = vld [vmem:[#allocation2 + $0xf8] sm:$0xff]
        %v1191 = vld [vmem:[#allocation2 + $0x100] sm:$0xff]
        %v1192 = vld [vmem:[#allocation2 + $0x108] sm:$0xff]
        %v1193 = vld [vmem:[#allocation2 + $0x110] sm:$0xff]
        %v1194 = vld [vmem:[#allocation2 + $0x118] sm:$0xff]
        %v1195 = vld [vmem:[#allocation2 + $0x120] sm:$0xff]
        %v1196 = vld [vmem:[#allocation2 + $0x128] sm:$0xff]
        %v1197 = vld [vmem:[#allocation2 + $0x130] sm:$0xff]
        %v1198 = vld [vmem:[#allocation2 + $0x138] sm:$0xff]
        %v1199 = vld [vmem:[#allocation2 + $0x140] sm:$0xff]
        %v1200 = vld [vmem:[#allocation2 + $0x148] sm:$0xff]
        %v1201 = vld [vmem:[#allocation2 + $0x150] sm:$0xff]
        %v1202 = vld [vmem:[#allocation2 + $0x158] sm:$0xff]
        %v1203 = vld [vmem:[#allocation2 + $0x160] sm:$0xff]
        %v1204 = vld [vmem:[#allocation2 + $0x168] sm:$0xff]
        %v1205 = vld [vmem:[#allocation2 + $0x170] sm:$0xff]
        %v1206 = vld [vmem:[#allocation2 + $0x178] sm:$0xff]
        %v1207 = vld [vmem:[#allocation2 + $0x180] sm:$0xff]
        %v1208 = vld [vmem:[#allocation2 + $0x188] sm:$0xff]
        %v1209 = vld [vmem:[#allocation2 + $0x190] sm:$0xff]
        %v1210 = vld [vmem:[#allocation2 + $0x198] sm:$0xff]
        %v1211 = vld [vmem:[#allocation2 + $0x1a0] sm:$0xff]
        %v1212 = vld [vmem:[#allocation2 + $0x1a8] sm:$0xff]
        %v1213 = vld [vmem:[#allocation2 + $0x1b0] sm:$0xff]
        %v1214 = vld [vmem:[#allocation2 + $0x1b8] sm:$0xff]
        %v1215 = vld [vmem:[#allocation2 + $0x1c0] sm:$0xff]
        %v1216 = vld [vmem:[#allocation2 + $0x1c8] sm:$0xff]
        %v1217 = vld [vmem:[#allocation2 + $0x1d0] sm:$0xff]
        %v1218 = vld [vmem:[#allocation2 + $0x1d8] sm:$0xff]
        %v1219 = vld [vmem:[#allocation2 + $0x1e0] sm:$0xff]
        %v1220 = vld [vmem:[#allocation2 + $0x1e8] sm:$0xff]
        %v1221 = vld [vmem:[#allocation2 + $0x1f0] sm:$0xff]
        %v1222 = vld [vmem:[#allocation2 + $0x1f8] sm:$0xff]
        %v1223 = vld [vmem:[%s249] sm:$0x1]
        %v1225 = vlaneseq
        %v1226 = vshrl.u32 %v1225, 7
        %v1227 = vsub.s32 0, %v1226
        %v1228 = vrot.slane %v1223, %v1227
        %v1230 = vadd.f32 %v1159, %v1228
        %v1231 = vadd.f32 %v1160, %v1228
        %v1232 = vadd.f32 %v1161, %v1228
        %v1233 = vadd.f32 %v1162, %v1228
        %v1234 = vadd.f32 %v1163, %v1228
        %v1235 = vadd.f32 %v1164, %v1228
        %v1236 = vadd.f32 %v1165, %v1228
        %v1237 = vadd.f32 %v1166, %v1228
        %v1238 = vadd.f32 %v1167, %v1228
        %v1239 = vadd.f32 %v1168, %v1228
        %v1240 = vadd.f32 %v1169, %v1228
        %v1241 = vadd.f32 %v1170, %v1228
        %v1242 = vadd.f32 %v1171, %v1228
        %v1243 = vadd.f32 %v1172, %v1228
        %v1244 = vadd.f32 %v1173, %v1228
        %v1245 = vadd.f32 %v1174, %v1228
        %v1246 = vadd.f32 %v1175, %v1228
        %v1247 = vadd.f32 %v1176, %v1228
        %v1248 = vadd.f32 %v1177, %v1228
        %v1249 = vadd.f32 %v1178, %v1228
        %v1250 = vadd.f32 %v1179, %v1228
        %v1251 = vadd.f32 %v1180, %v1228
        %v1252 = vadd.f32 %v1181, %v1228
        %v1253 = vadd.f32 %v1182, %v1228
        %v1254 = vadd.f32 %v1183, %v1228
        %v1255 = vadd.f32 %v1184, %v1228
        %v1256 = vadd.f32 %v1185, %v1228
        %v1257 = vadd.f32 %v1186, %v1228
        %v1258 = vadd.f32 %v1187, %v1228
        %v1259 = vadd.f32 %v1188, %v1228
        %v1260 = vadd.f32 %v1189, %v1228
        %v1261 = vadd.f32 %v1190, %v1228
        %v1262 = vadd.f32 %v1191, %v1228
        %v1263 = vadd.f32 %v1192, %v1228
        %v1264 = vadd.f32 %v1193, %v1228
        %v1265 = vadd.f32 %v1194, %v1228
        %v1266 = vadd.f32 %v1195, %v1228
        %v1267 = vadd.f32 %v1196, %v1228
        %v1268 = vadd.f32 %v1197, %v1228
        %v1269 = vadd.f32 %v1198, %v1228
        %v1270 = vadd.f32 %v1199, %v1228
        %v1271 = vadd.f32 %v1200, %v1228
        %v1272 = vadd.f32 %v1201, %v1228
        %v1273 = vadd.f32 %v1202, %v1228
        %v1274 = vadd.f32 %v1203, %v1228
        %v1275 = vadd.f32 %v1204, %v1228
        %v1276 = vadd.f32 %v1205, %v1228
        %v1277 = vadd.f32 %v1206, %v1228
        %v1278 = vadd.f32 %v1207, %v1228
        %v1279 = vadd.f32 %v1208, %v1228
        %v1280 = vadd.f32 %v1209, %v1228
        %v1281 = vadd.f32 %v1210, %v1228
        %v1282 = vadd.f32 %v1211, %v1228
        %v1283 = vadd.f32 %v1212, %v1228
        %v1284 = vadd.f32 %v1213, %v1228
        %v1285 = vadd.f32 %v1214, %v1228
        %v1286 = vadd.f32 %v1215, %v1228
        %v1287 = vadd.f32 %v1216, %v1228
        %v1288 = vadd.f32 %v1217, %v1228
        %v1289 = vadd.f32 %v1218, %v1228
        %v1290 = vadd.f32 %v1219, %v1228
        %v1291 = vadd.f32 %v1220, %v1228
        %v1292 = vadd.f32 %v1221, %v1228
        %v1293 = vadd.f32 %v1222, %v1228
        %v1294 = vpack.c.bf16 %v1231, %v1230
        %v1295 = vpack.c.bf16 %v1233, %v1232
        %v1296 = vpack.c.bf16 %v1235, %v1234
        %v1297 = vpack.c.bf16 %v1237, %v1236
        %v1298 = vpack.c.bf16 %v1239, %v1238
        %v1299 = vpack.c.bf16 %v1241, %v1240
        %v1300 = vpack.c.bf16 %v1243, %v1242
        %v1301 = vpack.c.bf16 %v1245, %v1244
        %v1302 = vpack.c.bf16 %v1247, %v1246
        %v1303 = vpack.c.bf16 %v1249, %v1248
        %v1304 = vpack.c.bf16 %v1251, %v1250
        %v1305 = vpack.c.bf16 %v1253, %v1252
        %v1306 = vpack.c.bf16 %v1255, %v1254
        %v1307 = vpack.c.bf16 %v1257, %v1256
        %v1308 = vpack.c.bf16 %v1259, %v1258
        %v1309 = vpack.c.bf16 %v1261, %v1260
        %v1310 = vpack.c.bf16 %v1263, %v1262
        %v1311 = vpack.c.bf16 %v1265, %v1264
        %v1312 = vpack.c.bf16 %v1267, %v1266
        %v1313 = vpack.c.bf16 %v1269, %v1268
        %v1314 = vpack.c.bf16 %v1271, %v1270
        %v1315 = vpack.c.bf16 %v1273, %v1272
        %v1316 = vpack.c.bf16 %v1275, %v1274
        %v1317 = vpack.c.bf16 %v1277, %v1276
        %v1318 = vpack.c.bf16 %v1279, %v1278
        %v1319 = vpack.c.bf16 %v1281, %v1280
        %v1320 = vpack.c.bf16 %v1283, %v1282
        %v1321 = vpack.c.bf16 %v1285, %v1284
        %v1322 = vpack.c.bf16 %v1287, %v1286
        %v1323 = vpack.c.bf16 %v1289, %v1288
        %v1324 = vpack.c.bf16 %v1291, %v1290
        %v1325 = vpack.c.bf16 %v1293, %v1292
        %v1358 = vunpack.c.l.b16 %v1294
        %v1359 = vunpack.c.h.b16 %v1294
        %v1360 = vunpack.c.l.b16 %v1295
        %v1361 = vunpack.c.h.b16 %v1295
        %v1362 = vunpack.c.l.b16 %v1296
        %v1363 = vunpack.c.h.b16 %v1296
        %v1364 = vunpack.c.l.b16 %v1297
        %v1365 = vunpack.c.h.b16 %v1297
        %v1366 = vunpack.c.l.b16 %v1298
        %v1367 = vunpack.c.h.b16 %v1298
        %v1368 = vunpack.c.l.b16 %v1299
        %v1369 = vunpack.c.h.b16 %v1299
        %v1370 = vunpack.c.l.b16 %v1300
        %v1371 = vunpack.c.h.b16 %v1300
        %v1372 = vunpack.c.l.b16 %v1301
        %v1373 = vunpack.c.h.b16 %v1301
        %v1374 = vunpack.c.l.b16 %v1302
        %v1375 = vunpack.c.h.b16 %v1302
        %v1376 = vunpack.c.l.b16 %v1303
        %v1377 = vunpack.c.h.b16 %v1303
        %v1378 = vunpack.c.l.b16 %v1304
        %v1379 = vunpack.c.h.b16 %v1304
        %v1380 = vunpack.c.l.b16 %v1305
        %v1381 = vunpack.c.h.b16 %v1305
        %v1382 = vunpack.c.l.b16 %v1306
        %v1383 = vunpack.c.h.b16 %v1306
        %v1384 = vunpack.c.l.b16 %v1307
        %v1385 = vunpack.c.h.b16 %v1307
        %v1386 = vunpack.c.l.b16 %v1308
        %v1387 = vunpack.c.h.b16 %v1308
        %v1388 = vunpack.c.l.b16 %v1309
        %v1389 = vunpack.c.h.b16 %v1309
        %v1390 = vunpack.c.l.b16 %v1310
        %v1391 = vunpack.c.h.b16 %v1310
        %v1392 = vunpack.c.l.b16 %v1311
        %v1393 = vunpack.c.h.b16 %v1311
        %v1394 = vunpack.c.l.b16 %v1312
        %v1395 = vunpack.c.h.b16 %v1312
        %v1396 = vunpack.c.l.b16 %v1313
        %v1397 = vunpack.c.h.b16 %v1313
        %v1398 = vunpack.c.l.b16 %v1314
        %v1399 = vunpack.c.h.b16 %v1314
        %v1400 = vunpack.c.l.b16 %v1315
        %v1401 = vunpack.c.h.b16 %v1315
        %v1402 = vunpack.c.l.b16 %v1316
        %v1403 = vunpack.c.h.b16 %v1316
        %v1404 = vunpack.c.l.b16 %v1317
        %v1405 = vunpack.c.h.b16 %v1317
        %v1406 = vunpack.c.l.b16 %v1318
        %v1407 = vunpack.c.h.b16 %v1318
        %v1408 = vunpack.c.l.b16 %v1319
        %v1409 = vunpack.c.h.b16 %v1319
        %v1410 = vunpack.c.l.b16 %v1320
        %v1411 = vunpack.c.h.b16 %v1320
        %v1412 = vunpack.c.l.b16 %v1321
        %v1413 = vunpack.c.h.b16 %v1321
        %v1414 = vunpack.c.l.b16 %v1322
        %v1415 = vunpack.c.h.b16 %v1322
        %v1416 = vunpack.c.l.b16 %v1323
        %v1417 = vunpack.c.h.b16 %v1323
        %v1418 = vunpack.c.l.b16 %v1324
        %v1419 = vunpack.c.h.b16 %v1324
        %v1420 = vunpack.c.l.b16 %v1325
        %v1421 = vunpack.c.h.b16 %v1325
        %v1422 = vpack.c.b16 %v1358, %v1358
        %v1423 = vpack.c.b16 %v1359, %v1359
        %v1424 = vpack.c.b16 %v1360, %v1360
        %v1425 = vpack.c.b16 %v1361, %v1361
        %v1426 = vpack.c.b16 %v1362, %v1362
        %v1427 = vpack.c.b16 %v1363, %v1363
        %v1428 = vpack.c.b16 %v1364, %v1364
        %v1429 = vpack.c.b16 %v1365, %v1365
        %v1430 = vpack.c.b16 %v1366, %v1366
        %v1431 = vpack.c.b16 %v1367, %v1367
        %v1432 = vpack.c.b16 %v1368, %v1368
        %v1433 = vpack.c.b16 %v1369, %v1369
        %v1434 = vpack.c.b16 %v1370, %v1370
        %v1435 = vpack.c.b16 %v1371, %v1371
        %v1436 = vpack.c.b16 %v1372, %v1372
        %v1437 = vpack.c.b16 %v1373, %v1373
        %v1438 = vpack.c.b16 %v1374, %v1374
        %v1439 = vpack.c.b16 %v1375, %v1375
        %v1440 = vpack.c.b16 %v1376, %v1376
        %v1441 = vpack.c.b16 %v1377, %v1377
        %v1442 = vpack.c.b16 %v1378, %v1378
        %v1443 = vpack.c.b16 %v1379, %v1379
        %v1444 = vpack.c.b16 %v1380, %v1380
        %v1445 = vpack.c.b16 %v1381, %v1381
        %v1446 = vpack.c.b16 %v1382, %v1382
        %v1447 = vpack.c.b16 %v1383, %v1383
        %v1448 = vpack.c.b16 %v1384, %v1384
        %v1449 = vpack.c.b16 %v1385, %v1385
        %v1450 = vpack.c.b16 %v1386, %v1386
        %v1451 = vpack.c.b16 %v1387, %v1387
        %v1452 = vpack.c.b16 %v1388, %v1388
        %v1453 = vpack.c.b16 %v1389, %v1389
        %v1454 = vpack.c.b16 %v1390, %v1390
        %v1455 = vpack.c.b16 %v1391, %v1391
        %v1456 = vpack.c.b16 %v1392, %v1392
        %v1457 = vpack.c.b16 %v1393, %v1393
        %v1458 = vpack.c.b16 %v1394, %v1394
        %v1459 = vpack.c.b16 %v1395, %v1395
        %v1460 = vpack.c.b16 %v1396, %v1396
        %v1461 = vpack.c.b16 %v1397, %v1397
        %v1462 = vpack.c.b16 %v1398, %v1398
        %v1463 = vpack.c.b16 %v1399, %v1399
        %v1464 = vpack.c.b16 %v1400, %v1400
        %v1465 = vpack.c.b16 %v1401, %v1401
        %v1466 = vpack.c.b16 %v1402, %v1402
        %v1467 = vpack.c.b16 %v1403, %v1403
        %v1468 = vpack.c.b16 %v1404, %v1404
        %v1469 = vpack.c.b16 %v1405, %v1405
        %v1470 = vpack.c.b16 %v1406, %v1406
        %v1471 = vpack.c.b16 %v1407, %v1407
        %v1472 = vpack.c.b16 %v1408, %v1408
        %v1473 = vpack.c.b16 %v1409, %v1409
        %v1474 = vpack.c.b16 %v1410, %v1410
        %v1475 = vpack.c.b16 %v1411, %v1411
        %v1476 = vpack.c.b16 %v1412, %v1412
        %v1477 = vpack.c.b16 %v1413, %v1413
        %v1478 = vpack.c.b16 %v1414, %v1414
        %v1479 = vpack.c.b16 %v1415, %v1415
        %v1480 = vpack.c.b16 %v1416, %v1416
        %v1481 = vpack.c.b16 %v1417, %v1417
        %v1482 = vpack.c.b16 %v1418, %v1418
        %v1483 = vpack.c.b16 %v1419, %v1419
        %v1484 = vpack.c.b16 %v1420, %v1420
        %v1485 = vpack.c.b16 %v1421, %v1421
        %vm1550 = vcmask 257024
        %1551 = vst.msk [vmem:[%s257] sm:$0xf] %vm1550, %v1422
        %1552 = vst.msk [vmem:[%s257 + $0x4] sm:$0xf] %vm1550, %v1423
        %1553 = vst.msk [vmem:[%s257 + $0x8] sm:$0xf] %vm1550, %v1424
        %1554 = vst.msk [vmem:[%s257 + $0xc] sm:$0xf] %vm1550, %v1425
        %1555 = vst.msk [vmem:[%s257 + $0x10] sm:$0xf] %vm1550, %v1426
        %1556 = vst.msk [vmem:[%s257 + $0x14] sm:$0xf] %vm1550, %v1427
        %1557 = vst.msk [vmem:[%s257 + $0x18] sm:$0xf] %vm1550, %v1428
        %1558 = vst.msk [vmem:[%s257 + $0x1c] sm:$0xf] %vm1550, %v1429
        %1559 = vst.msk [vmem:[%s257 + $0x20] sm:$0xf] %vm1550, %v1430
        %1560 = vst.msk [vmem:[%s257 + $0x24] sm:$0xf] %vm1550, %v1431
        %1561 = vst.msk [vmem:[%s257 + $0x28] sm:$0xf] %vm1550, %v1432
        %1562 = vst.msk [vmem:[%s257 + $0x2c] sm:$0xf] %vm1550, %v1433
        %1563 = vst.msk [vmem:[%s257 + $0x30] sm:$0xf] %vm1550, %v1434
        %1564 = vst.msk [vmem:[%s257 + $0x34] sm:$0xf] %vm1550, %v1435
        %1565 = vst.msk [vmem:[%s257 + $0x38] sm:$0xf] %vm1550, %v1436
        %1566 = vst.msk [vmem:[%s257 + $0x3c] sm:$0xf] %vm1550, %v1437
        %1567 = vst.msk [vmem:[%s257 + $0x40] sm:$0xf] %vm1550, %v1438
        %1568 = vst.msk [vmem:[%s257 + $0x44] sm:$0xf] %vm1550, %v1439
        %1569 = vst.msk [vmem:[%s257 + $0x48] sm:$0xf] %vm1550, %v1440
        %1570 = vst.msk [vmem:[%s257 + $0x4c] sm:$0xf] %vm1550, %v1441
        %1571 = vst.msk [vmem:[%s257 + $0x50] sm:$0xf] %vm1550, %v1442
        %1572 = vst.msk [vmem:[%s257 + $0x54] sm:$0xf] %vm1550, %v1443
        %1573 = vst.msk [vmem:[%s257 + $0x58] sm:$0xf] %vm1550, %v1444
        %1574 = vst.msk [vmem:[%s257 + $0x5c] sm:$0xf] %vm1550, %v1445
        %1575 = vst.msk [vmem:[%s257 + $0x60] sm:$0xf] %vm1550, %v1446
        %1576 = vst.msk [vmem:[%s257 + $0x64] sm:$0xf] %vm1550, %v1447
        %1577 = vst.msk [vmem:[%s257 + $0x68] sm:$0xf] %vm1550, %v1448
        %1578 = vst.msk [vmem:[%s257 + $0x6c] sm:$0xf] %vm1550, %v1449
        %1579 = vst.msk [vmem:[%s257 + $0x70] sm:$0xf] %vm1550, %v1450
        %1580 = vst.msk [vmem:[%s257 + $0x74] sm:$0xf] %vm1550, %v1451
        %1581 = vst.msk [vmem:[%s257 + $0x78] sm:$0xf] %vm1550, %v1452
        %1582 = vst.msk [vmem:[%s257 + $0x7c] sm:$0xf] %vm1550, %v1453
        %1583 = vst.msk [vmem:[%s257 + $0x80] sm:$0xf] %vm1550, %v1454
        %1584 = vst.msk [vmem:[%s257 + $0x84] sm:$0xf] %vm1550, %v1455
        %1585 = vst.msk [vmem:[%s257 + $0x88] sm:$0xf] %vm1550, %v1456
        %1586 = vst.msk [vmem:[%s257 + $0x8c] sm:$0xf] %vm1550, %v1457
        %1587 = vst.msk [vmem:[%s257 + $0x90] sm:$0xf] %vm1550, %v1458
        %1588 = vst.msk [vmem:[%s257 + $0x94] sm:$0xf] %vm1550, %v1459
        %1589 = vst.msk [vmem:[%s257 + $0x98] sm:$0xf] %vm1550, %v1460
        %1590 = vst.msk [vmem:[%s257 + $0x9c] sm:$0xf] %vm1550, %v1461
        %1591 = vst.msk [vmem:[%s257 + $0xa0] sm:$0xf] %vm1550, %v1462
        %1592 = vst.msk [vmem:[%s257 + $0xa4] sm:$0xf] %vm1550, %v1463
        %1593 = vst.msk [vmem:[%s257 + $0xa8] sm:$0xf] %vm1550, %v1464
        %1594 = vst.msk [vmem:[%s257 + $0xac] sm:$0xf] %vm1550, %v1465
        %1595 = vst.msk [vmem:[%s257 + $0xb0] sm:$0xf] %vm1550, %v1466
        %1596 = vst.msk [vmem:[%s257 + $0xb4] sm:$0xf] %vm1550, %v1467
        %1597 = vst.msk [vmem:[%s257 + $0xb8] sm:$0xf] %vm1550, %v1468
        %1598 = vst.msk [vmem:[%s257 + $0xbc] sm:$0xf] %vm1550, %v1469
        %1599 = vst.msk [vmem:[%s257 + $0xc0] sm:$0xf] %vm1550, %v1470
        %1600 = vst.msk [vmem:[%s257 + $0xc4] sm:$0xf] %vm1550, %v1471
        %1601 = vst.msk [vmem:[%s257 + $0xc8] sm:$0xf] %vm1550, %v1472
        %1602 = vst.msk [vmem:[%s257 + $0xcc] sm:$0xf] %vm1550, %v1473
        %1603 = vst.msk [vmem:[%s257 + $0xd0] sm:$0xf] %vm1550, %v1474
        %1604 = vst.msk [vmem:[%s257 + $0xd4] sm:$0xf] %vm1550, %v1475
        %1605 = vst.msk [vmem:[%s257 + $0xd8] sm:$0xf] %vm1550, %v1476
        %1606 = vst.msk [vmem:[%s257 + $0xdc] sm:$0xf] %vm1550, %v1477
        %1607 = vst.msk [vmem:[%s257 + $0xe0] sm:$0xf] %vm1550, %v1478
        %1608 = vst.msk [vmem:[%s257 + $0xe4] sm:$0xf] %vm1550, %v1479
        %1609 = vst.msk [vmem:[%s257 + $0xe8] sm:$0xf] %vm1550, %v1480
        %1610 = vst.msk [vmem:[%s257 + $0xec] sm:$0xf] %vm1550, %v1481
        %1611 = vst.msk [vmem:[%s257 + $0xf0] sm:$0xf] %vm1550, %v1482
        %1612 = vst.msk [vmem:[%s257 + $0xf4] sm:$0xf] %vm1550, %v1483
        %1613 = vst.msk [vmem:[%s257 + $0xf8] sm:$0xf] %vm1550, %v1484
        %1614 = vst.msk [vmem:[%s257 + $0xfc] sm:$0xf] %vm1550, %v1485
      $region40: #{_pallas_matmul_impl.1} parent=31 // pred_fallthru
        _
      %s1615 = smul.u32 64, %s19
      %p1616 = scmp.lt.s32.totalorder %s1615, 255
      %s1617 = scalar_select %p1616, %s1615, 255
      %p1618 = scmp.lt.s32.totalorder %s20, 0
      %s1619 = scalar_select %p1618, %s20, 0
      %s1620 = sadd.s32 %s1619, %s1617
      %s1621 = smul.addr %s1620, 4
      %s1622 = scalar_lea.vmem %s3, %s1621
      // Predicated region
      $region41: #{_pallas_matmul_impl.1} parent=31 // pred_check
        %p1623 = pneg %p135
      $region42: #{_pallas_matmul_impl.1} parent=31 // pred_check_branch
        %1625 = sbr.rel (%p1623) target = $region44
      $region43: #{_pallas_matmul_impl.1} parent=31 // pred_region
        %s1626 = smul.u32 64, %s19
      $region44: #{_pallas_matmul_impl.1} parent=31 // pred_fallthru
        _
    $region32: #{_pallas_matmul_impl.1} parent=5 // pred_fallthru
      _
    %p1627 = scmp.le.s32.totalorder 2, %s9
    // Predicated region
    $region45: #{_pallas_matmul_impl.1} parent=5 // pred_check
      %p1628 = pneg %p1627
    $region46: #{_pallas_matmul_impl.1} parent=5 // pred_check_branch
      %1630 = sbr.rel (%p1628) target = $region48
    $region47: #{_pallas_matmul_impl.1} parent=5 // pred_region
      %s1631 = ssub.s32 %s9, 2
      // Predicated region
      $region49: #{_pallas_matmul_impl.1} parent=47 // pred_check
        %p1632 = pneg %p141
      $region50: #{_pallas_matmul_impl.1} parent=47 // pred_check_branch
        %1634 = sbr.rel (%p1632) target = $region52
      $region51: #{_pallas_matmul_impl.1} parent=47 // pred_region
        %s1635 = smul.u32 64, %s22
        %p1636 = scmp.lt.s32.totalorder %s1635, 255
        %s1637 = scalar_select %p1636, %s1635, 255
        %p1638 = scmp.lt.s32.totalorder %s23, 0
        %s1639 = scalar_select %p1638, %s23, 0
        %s1640 = sadd.s32 %s1639, %s1637
        %s1641 = smul.addr %s1640, 4
        %s1642 = scalar_lea.vmem %s3, %s1641
      $region52: #{_pallas_matmul_impl.1} parent=47 // pred_fallthru
        _
    $region48: #{_pallas_matmul_impl.1} parent=5 // pred_fallthru
      _
  $region6: #{_pallas_matmul_impl.1} parent=0 // loop_footer
    %s13 = sadd.s32 1, %s9
  $region7: #{_pallas_matmul_impl.1} parent=0 // loop_footer_branch
    %8 = sbr.rel target = $region3
  $region8: #{_pallas_matmul_impl.1} parent=0 // loop_exit
    _

</llo_original>
